<compile_context>
chip_gen: v6e
topology: v6e:2x2x1
jax: 0.10.0
libtpu: 0.0.40
codegen_flags: <defaults>
</compile_context>

<pallas_src>
import functools

import jax
import jax.numpy as jnp
from jax.experimental import pallas as pl
from jax.experimental.pallas import tpu as pltpu

_EPS = 1e-5
_K = 2
_MXU_DTYPE = jnp.float32   # set to jnp.bfloat16 on v6e/v7x for faster MXU (f32 accum)

_STAGE_KEYS = ("wt", "gamma", "beta", "f1w", "f1b", "f2w", "f2b")


def _round_up(x, m):
    return (x + m - 1) // m * m


# ----------------------------------------------------------------------------
# One fused stage: 3x3 conv (stride 1, zero pad 1) -> BatchNorm2d (training
# batch stats) -> DyReLUB (k=2, conv_type='2d').  Operates on in-VMEM values;
# only the im2col scratch is a Ref.
# ----------------------------------------------------------------------------
def _stage(xb_list, wt, mask_l, mask_r, gamma, beta, f1w, f1b, f2w, f2b,
           rhs_ref, *, img_w):
    nb = len(xb_list)
    hw = xb_list[0].shape[1]
    cpad = rhs_ref.shape[0] // 9
    cout = wt.shape[0]
    pad = img_w + 1                                   # covers max |dh*W + dw|

    # ---- im2col: 9 lane-shifted, boundary-masked taps per batch element, ----
    # ---- written into the scratch with sublane/lane-aligned pl.ds stores ----
    for b in range(nb):
        xb = xb_list[b]
        if xb.shape[0] < cpad:                        # channel pad (static)
            xb = jnp.concatenate(
                [xb, jnp.zeros((cpad - xb.shape[0], hw), jnp.float32)], axis=0)
        xe = jnp.concatenate(
            [jnp.zeros((cpad, pad), jnp.float32), xb,
             jnp.zeros((cpad, pad), jnp.float32)], axis=1)   # (cpad, hw + 2*pad)
        t = 0
        for dh in (-1, 0, 1):
            for dw in (-1, 0, 1):
                off = pad + dh * img_w + dw
                tap = xe[:, off:off + hw]             # pure lane shift
                if dw == -1:                          # column-wrap masks only
                    tap = tap * mask_l
                elif dw == 1:
                    tap = tap * mask_r
                rhs_ref[pl.ds(t * cpad, cpad), pl.ds(b * hw, hw)] = tap
                t += 1

    # ---- single batched MXU matmul: K = 9*cpad, N = nb*hw ----
    rhs = rhs_ref[...]
    y = jnp.dot(wt.astype(_MXU_DTYPE), rhs.astype(_MXU_DTYPE),
                preferred_element_type=jnp.float32)   # (cout, nb*hw), f32

    # ---- BatchNorm batch statistics (never written to HBM) ----
    s1_cols, s2_cols = [], []
    for b in range(nb):
        yb = y[:, b * hw:(b + 1) * hw]
        s1_cols.append(jnp.sum(yb, axis=1, keepdims=True))
        s2_cols.append(jnp.sum(yb * yb, axis=1, keepdims=True))
    s1 = jnp.concatenate(s1_cols, axis=1)             # (cout, nb)  sum y
    s2 = jnp.concatenate(s2_cols, axis=1)             # (cout, nb)  sum y^2
    n = float(nb * hw)
    mu = jnp.sum(s1, axis=1, keepdims=True) / n       # (cout, 1)
    var = jnp.sum(s2, axis=1, keepdims=True) / n - mu * mu
    scale = gamma * jax.lax.rsqrt(var + _EPS)         # (cout, 1)
    shift = beta - mu * scale                         # (cout, 1)

    # ---- DyReLU-B theta path (channels on sublanes, no transposes) ----
    th = (s1 / float(hw)) * scale + shift             # (cout, nb): BN-out spatial mean
    th = jnp.maximum(
        jnp.dot(f1w, th, preferred_element_type=jnp.float32) + f1b, 0.0)
    th = jnp.dot(f2w, th, preferred_element_type=jnp.float32) + f2b  # (4*cout, nb)
    th = jnp.tanh(0.5 * th)                           # == 2*sigmoid(th) - 1
    # rows are grouped [a1 | a2 | b1 | b2] per channel (fc2 reordered at setup)
    a1 = th[0 * cout:1 * cout, :] + 1.0               # lambdas=[1,1,.5,.5], init_v=[1,0,0,0]
    a2 = th[1 * cout:2 * cout, :]
    c1 = th[2 * cout:3 * cout, :] * 0.5
    c2 = th[3 * cout:4 * cout, :] * 0.5

    # Fold the BN affine into the DyReLU coefficients:
    #   max(a1*(scale*y+shift)+b1, a2*(scale*y+shift)+b2) = max(A1*y+B1, A2*y+B2)
    A1 = a1 * scale
    A2 = a2 * scale
    B1 = a1 * shift + c1
    B2 = a2 * shift + c2

    outs = []
    for b in range(nb):
        yb = y[:, b * hw:(b + 1) * hw]
        outs.append(jnp.maximum(A1[:, b:b + 1] * yb + B1[:, b:b + 1],
                                A2[:, b:b + 1] * yb + B2[:, b:b + 1]))
    return outs                                       # list of (cout, hw)


# ----------------------------------------------------------------------------
# Fused conv_block kernel: both stages in one pallas_call, grid=(1,).
# ----------------------------------------------------------------------------
def _conv_block_kernel(x_ref, masks_ref,
                       wt1, g1, bt1, f1w1, f1b1, f2w1, f2b1,
                       wt2, g2, bt2, f1w2, f1b2, f2w2, f2b2,
                       o_ref, rhs1_ref, rhs2_ref, *, img_w):
    nb = x_ref.shape[0]
    m = masks_ref[...]
    mask_l = m[0:1, :]                                # valid where w >= 1   (dw=-1)
    mask_r = m[1:2, :]                                # valid where w <= W-2 (dw=+1)

    x1 = [x_ref[b] for b in range(nb)]
    y1 = _stage(x1, wt1[...], mask_l, mask_r, g1[...], bt1[...],
                f1w1[...], f1b1[...], f2w1[...], f2b1[...],
                rhs1_ref, img_w=img_w)
    y2 = _stage(y1, wt2[...], mask_l, mask_r, g2[...], bt2[...],
                f1w2[...], f1b2[...], f2w2[...], f2b2[...],
                rhs2_ref, img_w=img_w)
    for b in range(nb):
        o_ref[b] = y2[b]


# ----------------------------------------------------------------------------
# Host-side setup (run ONCE, outside the jitted hot path).
# ----------------------------------------------------------------------------
def lane_wrap_masks(H, W):
    w = jnp.arange(H * W, dtype=jnp.int32) % W
    return jnp.stack([(w >= 1).astype(jnp.float32),
                      (w <= W - 2).astype(jnp.float32)], axis=0)      # (2, H*W)


def prepare_stage_params(p, cin):
    """Layout-transform one stage's parameters for the fused kernel."""
    w = p["w"].astype(jnp.float32)                    # (9, cin, cout), tap-major
    cout = w.shape[-1]
    cpad = _round_up(cin, 8)
    hid = p["fc1_w"].shape[1]
    hid_pad = _round_up(hid, 8)

    # Conv weights: (9, cin, cout) -> (cout, 9*cpad), K-major, channel-padded.
    w_pad = jnp.zeros((9, cpad, cout), jnp.float32).at[:, :cin, :].set(w)
    wt = jnp.transpose(w_pad.reshape(9 * cpad, cout))                 # (cout, 9*cpad)

    # fc1 (column orientation, hidden dim padded to 8): (hid_pad, cout)
    f1w = jnp.zeros((hid_pad, cout), jnp.float32).at[:hid, :].set(p["fc1_w"].T)
    f1b = jnp.zeros((hid_pad, 1), jnp.float32).at[:hid, 0].set(p["fc1_b"])

    # fc2: reorder output index c*4+j -> j*cout+c (lane/sublane-friendly groups),
    # transpose to column orientation, pad hidden rows.
    f2w_r = p["fc2_w"].reshape(hid, cout, 4).transpose(0, 2, 1).reshape(hid, 4 * cout)
    f2w = jnp.zeros((4 * cout, hid_pad), jnp.float32).at[:, :hid].set(f2w_r.T)
    f2b = p["fc2_b"].reshape(cout, 4).T.reshape(4 * cout, 1)

    # p["b"] (conv bias) is intentionally unused: it cancels exactly in the
    # training-mode BatchNorm that follows.
    return {
        "wt": wt,
        "gamma": p["gamma"].reshape(cout, 1).astype(jnp.float32),
        "beta": p["beta"].reshape(cout, 1).astype(jnp.float32),
        "f1w": f1w, "f1b": f1b, "f2w": f2w, "f2b": f2b,
    }


def make_stage_params(key, in_ch, out_ch, reduction=4, k=2):
    ks = jax.random.split(key, 8)
    hid = out_ch // reduction
    return {
        "w": 0.1 * jax.random.normal(ks[0], (9, in_ch, out_ch), jnp.float32),
        "b": 0.1 * jax.random.normal(ks[1], (out_ch,), jnp.float32),   # unused (see above)
        "gamma": 1.0 + 0.1 * jax.random.normal(ks[2], (out_ch,), jnp.float32),
        "beta": 0.1 * jax.random.normal(ks[3], (out_ch,), jnp.float32),
        "fc1_w": 0.2 * jax.random.normal(ks[4], (out_ch, hid), jnp.float32),
        "fc1_b": 0.1 * jax.random.normal(ks[5], (hid,), jnp.float32),
        "fc2_w": 0.2 * jax.random.normal(ks[6], (hid, 2 * k * out_ch), jnp.float32),
        "fc2_b": 0.1 * jax.random.normal(ks[7], (2 * k * out_ch,), jnp.float32),
    }


# ----------------------------------------------------------------------------
# Forward pass: one pallas_call for the whole conv_block.
# ----------------------------------------------------------------------------
@jax.jit
def conv_block_forward(x_nchw, prep1, prep2, masks):
    B, Cin, H, W = x_nchw.shape
    HW = H * W
    cpad1 = prep1["wt"].shape[1] // 9
    cpad2 = prep2["wt"].shape[1] // 9
    cout2 = prep2["wt"].shape[0]

    x = x_nchw.astype(jnp.float32).reshape(B, Cin, HW)      # NCHW, spatial on lanes
    if Cin < cpad1:
        x = jnp.pad(x, ((0, 0), (0, cpad1 - Cin), (0, 0)))  # sublane-align channels

    operands = ([x, masks]
                + [prep1[k] for k in _STAGE_KEYS]
                + [prep2[k] for k in _STAGE_KEYS])

    def _fspec(shape):
        zeros = (0,) * len(shape)
        return pl.BlockSpec(shape, lambda i: zeros)          # full array per grid step

    out = pl.pallas_call(
        functools.partial(_conv_block_kernel, img_w=W),
        out_shape=jax.ShapeDtypeStruct((B, cout2, HW), jnp.float32),
        grid=(1,),
        in_specs=[_fspec(op.shape) for op in operands],
        out_specs=_fspec((B, cout2, HW)),
        scratch_shapes=[pltpu.VMEM((9 * cpad1, B * HW), jnp.float32),
                        pltpu.VMEM((9 * cpad2, B * HW), jnp.float32)],
        compiler_params=pltpu.CompilerParams(
            dimension_semantics=("arbitrary",)),
    )(*operands)
    return out.reshape(B, cout2, H, W)                       # NCHW out


if __name__ == "__main__":
    B, in_ch, out_ch, H, W = 2, 4, 8, 16, 16

    root = jax.random.PRNGKey(0)
    kx, k1, k2 = jax.random.split(root, 3)
    x = jax.random.normal(kx, (B, in_ch, H, W), jnp.float32)     # NCHW input
    params1 = make_stage_params(k1, in_ch, out_ch)
    params2 = make_stage_params(k2, out_ch, out_ch)

    # One-time setup (hoisted out of the hot path): weight layout transforms
    # and the two column-wrap masks.
    prep1 = prepare_stage_params(params1, in_ch)
    prep2 = prepare_stage_params(params2, out_ch)
    masks = lane_wrap_masks(H, W)

    out = conv_block_forward(x, prep1, prep2, masks)
    jax.block_until_ready(out)
    assert out.shape == (B, out_ch, H, W)
    print("KERNEL_OK")
</pallas_src>

<mosaic_0001>
module attributes {stable_mosaic.version = 11 : i64} {
  func.func @_conv_block_kernel(%arg0: i32, %arg1: memref<2x8x256xf32, #tpu.memory_space<vmem>>, %arg2: memref<2x256xf32, #tpu.memory_space<vmem>>, %arg3: memref<8x72xf32, #tpu.memory_space<vmem>>, %arg4: memref<8x1xf32, #tpu.memory_space<vmem>>, %arg5: memref<8x1xf32, #tpu.memory_space<vmem>>, %arg6: memref<8x8xf32, #tpu.memory_space<vmem>>, %arg7: memref<8x1xf32, #tpu.memory_space<vmem>>, %arg8: memref<32x8xf32, #tpu.memory_space<vmem>>, %arg9: memref<32x1xf32, #tpu.memory_space<vmem>>, %arg10: memref<8x72xf32, #tpu.memory_space<vmem>>, %arg11: memref<8x1xf32, #tpu.memory_space<vmem>>, %arg12: memref<8x1xf32, #tpu.memory_space<vmem>>, %arg13: memref<8x8xf32, #tpu.memory_space<vmem>>, %arg14: memref<8x1xf32, #tpu.memory_space<vmem>>, %arg15: memref<32x8xf32, #tpu.memory_space<vmem>>, %arg16: memref<32x1xf32, #tpu.memory_space<vmem>>, %arg17: memref<2x8x256xf32, #tpu.memory_space<vmem>>, %arg18: memref<72x512xf32, #tpu.memory_space<vmem>>, %arg19: memref<72x512xf32, #tpu.memory_space<vmem>>) attributes {dimension_semantics = [#tpu.dimension_semantics<arbitrary>], iteration_bounds = array<i64: 1>, scalar_prefetch = 0 : i64, scratch_operands = 2 : i64, tpu.core_type = #tpu.core_type<tc>, window_params = [{pipeline_mode = #tpu.pipeline_mode<synchronous>, transform_indices = @transform_0, window_bounds = array<i64: 2, 8, 256>}, {pipeline_mode = #tpu.pipeline_mode<synchronous>, transform_indices = @transform_1, window_bounds = array<i64: 2, 256>}, {pipeline_mode = #tpu.pipeline_mode<synchronous>, transform_indices = @transform_2, window_bounds = array<i64: 8, 72>}, {pipeline_mode = #tpu.pipeline_mode<synchronous>, transform_indices = @transform_3, window_bounds = array<i64: 8, 1>}, {pipeline_mode = #tpu.pipeline_mode<synchronous>, transform_indices = @transform_4, window_bounds = array<i64: 8, 1>}, {pipeline_mode = #tpu.pipeline_mode<synchronous>, transform_indices = @transform_5, window_bounds = array<i64: 8, 8>}, {pipeline_mode = #tpu.pipeline_mode<synchronous>, transform_indices = @transform_6, window_bounds = array<i64: 8, 1>}, {pipeline_mode = #tpu.pipeline_mode<synchronous>, transform_indices = @transform_7, window_bounds = array<i64: 32, 8>}, {pipeline_mode = #tpu.pipeline_mode<synchronous>, transform_indices = @transform_8, window_bounds = array<i64: 32, 1>}, {pipeline_mode = #tpu.pipeline_mode<synchronous>, transform_indices = @transform_9, window_bounds = array<i64: 8, 72>}, {pipeline_mode = #tpu.pipeline_mode<synchronous>, transform_indices = @transform_10, window_bounds = array<i64: 8, 1>}, {pipeline_mode = #tpu.pipeline_mode<synchronous>, transform_indices = @transform_11, window_bounds = array<i64: 8, 1>}, {pipeline_mode = #tpu.pipeline_mode<synchronous>, transform_indices = @transform_12, window_bounds = array<i64: 8, 8>}, {pipeline_mode = #tpu.pipeline_mode<synchronous>, transform_indices = @transform_13, window_bounds = array<i64: 8, 1>}, {pipeline_mode = #tpu.pipeline_mode<synchronous>, transform_indices = @transform_14, window_bounds = array<i64: 32, 8>}, {pipeline_mode = #tpu.pipeline_mode<synchronous>, transform_indices = @transform_15, window_bounds = array<i64: 32, 1>}, {pipeline_mode = #tpu.pipeline_mode<synchronous>, transform_indices = @transform_16, window_bounds = array<i64: 2, 8, 256>}]} {
    %c0 = arith.constant 0 : index
    %c0_0 = arith.constant 0 : index
    %0 = vector.load %arg2[%c0, %c0_0] : memref<2x256xf32, #tpu.memory_space<vmem>>, vector<2x256xf32>
    %1 = vector.extract_strided_slice %0 {offsets = [0, 0], sizes = [1, 256], strides = [1, 1]} : vector<2x256xf32> to vector<1x256xf32>
    %2 = vector.extract_strided_slice %0 {offsets = [1, 0], sizes = [1, 256], strides = [1, 1]} : vector<2x256xf32> to vector<1x256xf32>
    %c0_1 = arith.constant 0 : index
    %c0_2 = arith.constant 0 : index
    %c0_3 = arith.constant 0 : index
    %3 = vector.load %arg1[%c0_1, %c0_2, %c0_3] : memref<2x8x256xf32, #tpu.memory_space<vmem>>, vector<1x8x256xf32>
    %4 = vector.shape_cast %3 : vector<1x8x256xf32> to vector<8x256xf32>
    %c1 = arith.constant 1 : index
    %c0_4 = arith.constant 0 : index
    %c0_5 = arith.constant 0 : index
    %5 = vector.load %arg1[%c1, %c0_4, %c0_5] : memref<2x8x256xf32, #tpu.memory_space<vmem>>, vector<1x8x256xf32>
    %6 = vector.shape_cast %5 : vector<1x8x256xf32> to vector<8x256xf32>
    %c0_6 = arith.constant 0 : index
    %c0_7 = arith.constant 0 : index
    %7 = vector.load %arg3[%c0_6, %c0_7] : memref<8x72xf32, #tpu.memory_space<vmem>>, vector<8x72xf32>
    %c0_8 = arith.constant 0 : index
    %c0_9 = arith.constant 0 : index
    %8 = vector.load %arg4[%c0_8, %c0_9] : memref<8x1xf32, #tpu.memory_space<vmem>>, vector<8x1xf32>
    %c0_10 = arith.constant 0 : index
    %c0_11 = arith.constant 0 : index
    %9 = vector.load %arg5[%c0_10, %c0_11] : memref<8x1xf32, #tpu.memory_space<vmem>>, vector<8x1xf32>
    %c0_12 = arith.constant 0 : index
    %c0_13 = arith.constant 0 : index
    %10 = vector.load %arg6[%c0_12, %c0_13] : memref<8x8xf32, #tpu.memory_space<vmem>>, vector<8x8xf32>
    %c0_14 = arith.constant 0 : index
    %c0_15 = arith.constant 0 : index
    %11 = vector.load %arg7[%c0_14, %c0_15] : memref<8x1xf32, #tpu.memory_space<vmem>>, vector<8x1xf32>
    %c0_16 = arith.constant 0 : index
    %c0_17 = arith.constant 0 : index
    %12 = vector.load %arg8[%c0_16, %c0_17] : memref<32x8xf32, #tpu.memory_space<vmem>>, vector<32x8xf32>
    %c0_18 = arith.constant 0 : index
    %c0_19 = arith.constant 0 : index
    %13 = vector.load %arg9[%c0_18, %c0_19] : memref<32x1xf32, #tpu.memory_space<vmem>>, vector<32x1xf32>
    %cst = arith.constant 0.000000e+00 : f32
    %14 = vector.broadcast %cst : f32 to vector<8x17xf32>
    %cst_20 = arith.constant 0.000000e+00 : f32
    %15 = vector.broadcast %cst_20 : f32 to vector<8x17xf32>
    %16 = tpu.concatenate %14, %4, %15 in 1 : vector<8x17xf32>, vector<8x256xf32>, vector<8x17xf32> -> vector<8x290xf32>
    %17 = vector.extract_strided_slice %16 {offsets = [0, 0], sizes = [8, 256], strides = [1, 1]} : vector<8x290xf32> to vector<8x256xf32>
    %18 = vector.broadcast %1 : vector<1x256xf32> to vector<8x256xf32>
    %19 = arith.mulf %17, %18 : vector<8x256xf32>
    %c0_21 = arith.constant 0 : index
    %c0_22 = arith.constant 0 : index
    %20 = vector.load %arg18[%c0_21, %c0_22] : memref<72x512xf32, #tpu.memory_space<vmem>>, vector<8x256xf32>
    tpu.vector_store %arg18[%c0_21, %c0_22], %19 {strides = array<i32>} : memref<72x512xf32, #tpu.memory_space<vmem>>, vector<8x256xf32>,
    %21 = vector.extract_strided_slice %16 {offsets = [0, 1], sizes = [8, 256], strides = [1, 1]} : vector<8x290xf32> to vector<8x256xf32>
    %c8 = arith.constant 8 : index
    %c0_23 = arith.constant 0 : index
    %22 = vector.load %arg18[%c8, %c0_23] : memref<72x512xf32, #tpu.memory_space<vmem>>, vector<8x256xf32>
    tpu.vector_store %arg18[%c8, %c0_23], %21 {strides = array<i32>} : memref<72x512xf32, #tpu.memory_space<vmem>>, vector<8x256xf32>,
    %23 = vector.extract_strided_slice %16 {offsets = [0, 2], sizes = [8, 256], strides = [1, 1]} : vector<8x290xf32> to vector<8x256xf32>
    %24 = vector.broadcast %2 : vector<1x256xf32> to vector<8x256xf32>
    %25 = arith.mulf %23, %24 : vector<8x256xf32>
    %c16 = arith.constant 16 : index
    %c0_24 = arith.constant 0 : index
    %26 = vector.load %arg18[%c16, %c0_24] : memref<72x512xf32, #tpu.memory_space<vmem>>, vector<8x256xf32>
    tpu.vector_store %arg18[%c16, %c0_24], %25 {strides = array<i32>} : memref<72x512xf32, #tpu.memory_space<vmem>>, vector<8x256xf32>,
    %27 = vector.extract_strided_slice %16 {offsets = [0, 16], sizes = [8, 256], strides = [1, 1]} : vector<8x290xf32> to vector<8x256xf32>
    %28 = vector.broadcast %1 : vector<1x256xf32> to vector<8x256xf32>
    %29 = arith.mulf %27, %28 : vector<8x256xf32>
    %c24 = arith.constant 24 : index
    %c0_25 = arith.constant 0 : index
    %30 = vector.load %arg18[%c24, %c0_25] : memref<72x512xf32, #tpu.memory_space<vmem>>, vector<8x256xf32>
    tpu.vector_store %arg18[%c24, %c0_25], %29 {strides = array<i32>} : memref<72x512xf32, #tpu.memory_space<vmem>>, vector<8x256xf32>,
    %31 = vector.extract_strided_slice %16 {offsets = [0, 17], sizes = [8, 256], strides = [1, 1]} : vector<8x290xf32> to vector<8x256xf32>
    %c32 = arith.constant 32 : index
    %c0_26 = arith.constant 0 : index
    %32 = vector.load %arg18[%c32, %c0_26] : memref<72x512xf32, #tpu.memory_space<vmem>>, vector<8x256xf32>
    tpu.vector_store %arg18[%c32, %c0_26], %31 {strides = array<i32>} : memref<72x512xf32, #tpu.memory_space<vmem>>, vector<8x256xf32>,
    %33 = vector.extract_strided_slice %16 {offsets = [0, 18], sizes = [8, 256], strides = [1, 1]} : vector<8x290xf32> to vector<8x256xf32>
    %34 = vector.broadcast %2 : vector<1x256xf32> to vector<8x256xf32>
    %35 = arith.mulf %33, %34 : vector<8x256xf32>
    %c40 = arith.constant 40 : index
    %c0_27 = arith.constant 0 : index
    %36 = vector.load %arg18[%c40, %c0_27] : memref<72x512xf32, #tpu.memory_space<vmem>>, vector<8x256xf32>
    tpu.vector_store %arg18[%c40, %c0_27], %35 {strides = array<i32>} : memref<72x512xf32, #tpu.memory_space<vmem>>, vector<8x256xf32>,
    %37 = vector.extract_strided_slice %16 {offsets = [0, 32], sizes = [8, 256], strides = [1, 1]} : vector<8x290xf32> to vector<8x256xf32>
    %38 = vector.broadcast %1 : vector<1x256xf32> to vector<8x256xf32>
    %39 = arith.mulf %37, %38 : vector<8x256xf32>
    %c48 = arith.constant 48 : index
    %c0_28 = arith.constant 0 : index
    %40 = vector.load %arg18[%c48, %c0_28] : memref<72x512xf32, #tpu.memory_space<vmem>>, vector<8x256xf32>
    tpu.vector_store %arg18[%c48, %c0_28], %39 {strides = array<i32>} : memref<72x512xf32, #tpu.memory_space<vmem>>, vector<8x256xf32>,
    %41 = vector.extract_strided_slice %16 {offsets = [0, 33], sizes = [8, 256], strides = [1, 1]} : vector<8x290xf32> to vector<8x256xf32>
    %c56 = arith.constant 56 : index
    %c0_29 = arith.constant 0 : index
    %42 = vector.load %arg18[%c56, %c0_29] : memref<72x512xf32, #tpu.memory_space<vmem>>, vector<8x256xf32>
    tpu.vector_store %arg18[%c56, %c0_29], %41 {strides = array<i32>} : memref<72x512xf32, #tpu.memory_space<vmem>>, vector<8x256xf32>,
    %43 = vector.extract_strided_slice %16 {offsets = [0, 34], sizes = [8, 256], strides = [1, 1]} : vector<8x290xf32> to vector<8x256xf32>
    %44 = vector.broadcast %2 : vector<1x256xf32> to vector<8x256xf32>
    %45 = arith.mulf %43, %44 : vector<8x256xf32>
    %c64 = arith.constant 64 : index
    %c0_30 = arith.constant 0 : index
    %46 = vector.load %arg18[%c64, %c0_30] : memref<72x512xf32, #tpu.memory_space<vmem>>, vector<8x256xf32>
    tpu.vector_store %arg18[%c64, %c0_30], %45 {strides = array<i32>} : memref<72x512xf32, #tpu.memory_space<vmem>>, vector<8x256xf32>,
    %cst_31 = arith.constant 0.000000e+00 : f32
    %47 = vector.broadcast %cst_31 : f32 to vector<8x17xf32>
    %cst_32 = arith.constant 0.000000e+00 : f32
    %48 = vector.broadcast %cst_32 : f32 to vector<8x17xf32>
    %49 = tpu.concatenate %47, %6, %48 in 1 : vector<8x17xf32>, vector<8x256xf32>, vector<8x17xf32> -> vector<8x290xf32>
    %50 = vector.extract_strided_slice %49 {offsets = [0, 0], sizes = [8, 256], strides = [1, 1]} : vector<8x290xf32> to vector<8x256xf32>
    %51 = vector.broadcast %1 : vector<1x256xf32> to vector<8x256xf32>
    %52 = arith.mulf %50, %51 : vector<8x256xf32>
    %c0_33 = arith.constant 0 : index
    %c256 = arith.constant 256 : index
    %53 = vector.load %arg18[%c0_33, %c256] : memref<72x512xf32, #tpu.memory_space<vmem>>, vector<8x256xf32>
    tpu.vector_store %arg18[%c0_33, %c256], %52 {strides = array<i32>} : memref<72x512xf32, #tpu.memory_space<vmem>>, vector<8x256xf32>,
    %54 = vector.extract_strided_slice %49 {offsets = [0, 1], sizes = [8, 256], strides = [1, 1]} : vector<8x290xf32> to vector<8x256xf32>
    %c8_34 = arith.constant 8 : index
    %c256_35 = arith.constant 256 : index
    %55 = vector.load %arg18[%c8_34, %c256_35] : memref<72x512xf32, #tpu.memory_space<vmem>>, vector<8x256xf32>
    tpu.vector_store %arg18[%c8_34, %c256_35], %54 {strides = array<i32>} : memref<72x512xf32, #tpu.memory_space<vmem>>, vector<8x256xf32>,
    %56 = vector.extract_strided_slice %49 {offsets = [0, 2], sizes = [8, 256], strides = [1, 1]} : vector<8x290xf32> to vector<8x256xf32>
    %57 = vector.broadcast %2 : vector<1x256xf32> to vector<8x256xf32>
    %58 = arith.mulf %56, %57 : vector<8x256xf32>
    %c16_36 = arith.constant 16 : index
    %c256_37 = arith.constant 256 : index
    %59 = vector.load %arg18[%c16_36, %c256_37] : memref<72x512xf32, #tpu.memory_space<vmem>>, vector<8x256xf32>
    tpu.vector_store %arg18[%c16_36, %c256_37], %58 {strides = array<i32>} : memref<72x512xf32, #tpu.memory_space<vmem>>, vector<8x256xf32>,
    %60 = vector.extract_strided_slice %49 {offsets = [0, 16], sizes = [8, 256], strides = [1, 1]} : vector<8x290xf32> to vector<8x256xf32>
    %61 = vector.broadcast %1 : vector<1x256xf32> to vector<8x256xf32>
    %62 = arith.mulf %60, %61 : vector<8x256xf32>
    %c24_38 = arith.constant 24 : index
    %c256_39 = arith.constant 256 : index
    %63 = vector.load %arg18[%c24_38, %c256_39] : memref<72x512xf32, #tpu.memory_space<vmem>>, vector<8x256xf32>
    tpu.vector_store %arg18[%c24_38, %c256_39], %62 {strides = array<i32>} : memref<72x512xf32, #tpu.memory_space<vmem>>, vector<8x256xf32>,
    %64 = vector.extract_strided_slice %49 {offsets = [0, 17], sizes = [8, 256], strides = [1, 1]} : vector<8x290xf32> to vector<8x256xf32>
    %c32_40 = arith.constant 32 : index
    %c256_41 = arith.constant 256 : index
    %65 = vector.load %arg18[%c32_40, %c256_41] : memref<72x512xf32, #tpu.memory_space<vmem>>, vector<8x256xf32>
    tpu.vector_store %arg18[%c32_40, %c256_41], %64 {strides = array<i32>} : memref<72x512xf32, #tpu.memory_space<vmem>>, vector<8x256xf32>,
    %66 = vector.extract_strided_slice %49 {offsets = [0, 18], sizes = [8, 256], strides = [1, 1]} : vector<8x290xf32> to vector<8x256xf32>
    %67 = vector.broadcast %2 : vector<1x256xf32> to vector<8x256xf32>
    %68 = arith.mulf %66, %67 : vector<8x256xf32>
    %c40_42 = arith.constant 40 : index
    %c256_43 = arith.constant 256 : index
    %69 = vector.load %arg18[%c40_42, %c256_43] : memref<72x512xf32, #tpu.memory_space<vmem>>, vector<8x256xf32>
    tpu.vector_store %arg18[%c40_42, %c256_43], %68 {strides = array<i32>} : memref<72x512xf32, #tpu.memory_space<vmem>>, vector<8x256xf32>,
    %70 = vector.extract_strided_slice %49 {offsets = [0, 32], sizes = [8, 256], strides = [1, 1]} : vector<8x290xf32> to vector<8x256xf32>
    %71 = vector.broadcast %1 : vector<1x256xf32> to vector<8x256xf32>
    %72 = arith.mulf %70, %71 : vector<8x256xf32>
    %c48_44 = arith.constant 48 : index
    %c256_45 = arith.constant 256 : index
    %73 = vector.load %arg18[%c48_44, %c256_45] : memref<72x512xf32, #tpu.memory_space<vmem>>, vector<8x256xf32>
    tpu.vector_store %arg18[%c48_44, %c256_45], %72 {strides = array<i32>} : memref<72x512xf32, #tpu.memory_space<vmem>>, vector<8x256xf32>,
    %74 = vector.extract_strided_slice %49 {offsets = [0, 33], sizes = [8, 256], strides = [1, 1]} : vector<8x290xf32> to vector<8x256xf32>
    %c56_46 = arith.constant 56 : index
    %c256_47 = arith.constant 256 : index
    %75 = vector.load %arg18[%c56_46, %c256_47] : memref<72x512xf32, #tpu.memory_space<vmem>>, vector<8x256xf32>
    tpu.vector_store %arg18[%c56_46, %c256_47], %74 {strides = array<i32>} : memref<72x512xf32, #tpu.memory_space<vmem>>, vector<8x256xf32>,
    %76 = vector.extract_strided_slice %49 {offsets = [0, 34], sizes = [8, 256], strides = [1, 1]} : vector<8x290xf32> to vector<8x256xf32>
    %77 = vector.broadcast %2 : vector<1x256xf32> to vector<8x256xf32>
    %78 = arith.mulf %76, %77 : vector<8x256xf32>
    %c64_48 = arith.constant 64 : index
    %c256_49 = arith.constant 256 : index
    %79 = vector.load %arg18[%c64_48, %c256_49] : memref<72x512xf32, #tpu.memory_space<vmem>>, vector<8x256xf32>
    tpu.vector_store %arg18[%c64_48, %c256_49], %78 {strides = array<i32>} : memref<72x512xf32, #tpu.memory_space<vmem>>, vector<8x256xf32>,
    %c0_50 = arith.constant 0 : index
    %c0_51 = arith.constant 0 : index
    %80 = vector.load %arg18[%c0_50, %c0_51] : memref<72x512xf32, #tpu.memory_space<vmem>>, vector<72x512xf32>
    %cst_52 = arith.constant dense<0.000000e+00> : vector<8x512xf32>
    %81 = tpu.matmul %7, %80, %cst_52 {dimension_numbers = #tpu.dot_dimension_numbers<[1], [0], [0], [1], [0, 0, 1, 1], [], []>} : vector<8x72xf32>, vector<72x512xf32>, vector<8x512xf32> -> vector<8x512xf32>
    %82 = vector.extract_strided_slice %81 {offsets = [0, 0], sizes = [8, 256], strides = [1, 1]} : vector<8x512xf32> to vector<8x256xf32>
    %cst_53 = arith.constant dense<0.000000e+00> : vector<8xf32>
    %83 = vector.multi_reduction <add>, %82, %cst_53 [1] : vector<8x256xf32> to vector<8xf32>
    %84 = vector.shape_cast %83 : vector<8xf32> to vector<8x1xf32>
    %85 = arith.mulf %82, %82 : vector<8x256xf32>
    %cst_54 = arith.constant dense<0.000000e+00> : vector<8xf32>
    %86 = vector.multi_reduction <add>, %85, %cst_54 [1] : vector<8x256xf32> to vector<8xf32>
    %87 = vector.shape_cast %86 : vector<8xf32> to vector<8x1xf32>
    %88 = vector.extract_strided_slice %81 {offsets = [0, 256], sizes = [8, 256], strides = [1, 1]} : vector<8x512xf32> to vector<8x256xf32>
    %cst_55 = arith.constant dense<0.000000e+00> : vector<8xf32>
    %89 = vector.multi_reduction <add>, %88, %cst_55 [1] : vector<8x256xf32> to vector<8xf32>
    %90 = vector.shape_cast %89 : vector<8xf32> to vector<8x1xf32>
    %91 = arith.mulf %88, %88 : vector<8x256xf32>
    %cst_56 = arith.constant dense<0.000000e+00> : vector<8xf32>
    %92 = vector.multi_reduction <add>, %91, %cst_56 [1] : vector<8x256xf32> to vector<8xf32>
    %93 = vector.shape_cast %92 : vector<8xf32> to vector<8x1xf32>
    %94 = tpu.concatenate %84, %90 in 1 : vector<8x1xf32>, vector<8x1xf32> -> vector<8x2xf32>
    %95 = tpu.concatenate %87, %93 in 1 : vector<8x1xf32>, vector<8x1xf32> -> vector<8x2xf32>
    %cst_57 = arith.constant dense<0.000000e+00> : vector<8xf32>
    %96 = vector.multi_reduction <add>, %94, %cst_57 [1] : vector<8x2xf32> to vector<8xf32>
    %97 = vector.shape_cast %96 : vector<8xf32> to vector<8x1xf32>
    %cst_58 = arith.constant 5.120000e+02 : f32
    %98 = vector.broadcast %cst_58 : f32 to vector<8x1xf32>
    %99 = arith.divf %97, %98 : vector<8x1xf32>
    %cst_59 = arith.constant dense<0.000000e+00> : vector<8xf32>
    %100 = vector.multi_reduction <add>, %95, %cst_59 [1] : vector<8x2xf32> to vector<8xf32>
    %101 = vector.shape_cast %100 : vector<8xf32> to vector<8x1xf32>
    %cst_60 = arith.constant 5.120000e+02 : f32
    %102 = vector.broadcast %cst_60 : f32 to vector<8x1xf32>
    %103 = arith.divf %101, %102 : vector<8x1xf32>
    %104 = arith.mulf %99, %99 : vector<8x1xf32>
    %105 = arith.subf %103, %104 : vector<8x1xf32>
    %cst_61 = arith.constant 9.99999974E-6 : f32
    %106 = vector.broadcast %cst_61 : f32 to vector<8x1xf32>
    %107 = arith.addf %105, %106 : vector<8x1xf32>
    %108 = math.rsqrt %107 : vector<8x1xf32>
    %109 = arith.mulf %8, %108 : vector<8x1xf32>
    %110 = arith.mulf %99, %109 : vector<8x1xf32>
    %111 = arith.subf %9, %110 : vector<8x1xf32>
    %cst_62 = arith.constant 2.560000e+02 : f32
    %112 = vector.broadcast %cst_62 : f32 to vector<8x2xf32>
    %113 = arith.divf %94, %112 : vector<8x2xf32>
    %114 = vector.broadcast %109 : vector<8x1xf32> to vector<8x2xf32>
    %115 = arith.mulf %113, %114 : vector<8x2xf32>
    %116 = vector.broadcast %111 : vector<8x1xf32> to vector<8x2xf32>
    %117 = arith.addf %115, %116 : vector<8x2xf32>
    %cst_63 = arith.constant dense<0.000000e+00> : vector<8x2xf32>
    %118 = tpu.matmul %10, %117, %cst_63 {dimension_numbers = #tpu.dot_dimension_numbers<[1], [0], [0], [1], [0, 0, 1, 1], [], []>} : vector<8x8xf32>, vector<8x2xf32>, vector<8x2xf32> -> vector<8x2xf32>
    %119 = vector.broadcast %11 : vector<8x1xf32> to vector<8x2xf32>
    %120 = arith.addf %118, %119 : vector<8x2xf32>
    %cst_64 = arith.constant 0.000000e+00 : f32
    %121 = vector.broadcast %cst_64 : f32 to vector<8x2xf32>
    %122 = arith.maximumf %120, %121 : vector<8x2xf32>
    %cst_65 = arith.constant dense<0.000000e+00> : vector<32x2xf32>
    %123 = tpu.matmul %12, %122, %cst_65 {dimension_numbers = #tpu.dot_dimension_numbers<[1], [0], [0], [1], [0, 0, 1, 1], [], []>} : vector<32x8xf32>, vector<8x2xf32>, vector<32x2xf32> -> vector<32x2xf32>
    %124 = vector.broadcast %13 : vector<32x1xf32> to vector<32x2xf32>
    %125 = arith.addf %123, %124 : vector<32x2xf32>
    %cst_66 = arith.constant 5.000000e-01 : f32
    %126 = vector.broadcast %cst_66 : f32 to vector<32x2xf32>
    %127 = arith.mulf %126, %125 : vector<32x2xf32>
    %128 = math.tanh %127 : vector<32x2xf32>
    %129 = vector.extract_strided_slice %128 {offsets = [0, 0], sizes = [8, 2], strides = [1, 1]} : vector<32x2xf32> to vector<8x2xf32>
    %cst_67 = arith.constant 1.000000e+00 : f32
    %130 = vector.broadcast %cst_67 : f32 to vector<8x2xf32>
    %131 = arith.addf %129, %130 : vector<8x2xf32>
    %132 = vector.extract_strided_slice %128 {offsets = [8, 0], sizes = [8, 2], strides = [1, 1]} : vector<32x2xf32> to vector<8x2xf32>
    %133 = vector.extract_strided_slice %128 {offsets = [16, 0], sizes = [8, 2], strides = [1, 1]} : vector<32x2xf32> to vector<8x2xf32>
    %cst_68 = arith.constant 5.000000e-01 : f32
    %134 = vector.broadcast %cst_68 : f32 to vector<8x2xf32>
    %135 = arith.mulf %133, %134 : vector<8x2xf32>
    %136 = vector.extract_strided_slice %128 {offsets = [24, 0], sizes = [8, 2], strides = [1, 1]} : vector<32x2xf32> to vector<8x2xf32>
    %cst_69 = arith.constant 5.000000e-01 : f32
    %137 = vector.broadcast %cst_69 : f32 to vector<8x2xf32>
    %138 = arith.mulf %136, %137 : vector<8x2xf32>
    %139 = vector.broadcast %109 : vector<8x1xf32> to vector<8x2xf32>
    %140 = arith.mulf %131, %139 : vector<8x2xf32>
    %141 = vector.broadcast %109 : vector<8x1xf32> to vector<8x2xf32>
    %142 = arith.mulf %132, %141 : vector<8x2xf32>
    %143 = vector.broadcast %111 : vector<8x1xf32> to vector<8x2xf32>
    %144 = arith.mulf %131, %143 : vector<8x2xf32>
    %145 = arith.addf %144, %135 : vector<8x2xf32>
    %146 = vector.broadcast %111 : vector<8x1xf32> to vector<8x2xf32>
    %147 = arith.mulf %132, %146 : vector<8x2xf32>
    %148 = arith.addf %147, %138 : vector<8x2xf32>
    %149 = vector.extract_strided_slice %81 {offsets = [0, 0], sizes = [8, 256], strides = [1, 1]} : vector<8x512xf32> to vector<8x256xf32>
    %150 = vector.extract_strided_slice %140 {offsets = [0, 0], sizes = [8, 1], strides = [1, 1]} : vector<8x2xf32> to vector<8x1xf32>
    %151 = vector.broadcast %150 : vector<8x1xf32> to vector<8x256xf32>
    %152 = arith.mulf %151, %149 : vector<8x256xf32>
    %153 = vector.extract_strided_slice %145 {offsets = [0, 0], sizes = [8, 1], strides = [1, 1]} : vector<8x2xf32> to vector<8x1xf32>
    %154 = vector.broadcast %153 : vector<8x1xf32> to vector<8x256xf32>
    %155 = arith.addf %152, %154 : vector<8x256xf32>
    %156 = vector.extract_strided_slice %142 {offsets = [0, 0], sizes = [8, 1], strides = [1, 1]} : vector<8x2xf32> to vector<8x1xf32>
    %157 = vector.broadcast %156 : vector<8x1xf32> to vector<8x256xf32>
    %158 = arith.mulf %157, %149 : vector<8x256xf32>
    %159 = vector.extract_strided_slice %148 {offsets = [0, 0], sizes = [8, 1], strides = [1, 1]} : vector<8x2xf32> to vector<8x1xf32>
    %160 = vector.broadcast %159 : vector<8x1xf32> to vector<8x256xf32>
    %161 = arith.addf %158, %160 : vector<8x256xf32>
    %162 = arith.maximumf %155, %161 : vector<8x256xf32>
    %163 = vector.extract_strided_slice %81 {offsets = [0, 256], sizes = [8, 256], strides = [1, 1]} : vector<8x512xf32> to vector<8x256xf32>
    %164 = vector.extract_strided_slice %140 {offsets = [0, 1], sizes = [8, 1], strides = [1, 1]} : vector<8x2xf32> to vector<8x1xf32>
    %165 = vector.broadcast %164 : vector<8x1xf32> to vector<8x256xf32>
    %166 = arith.mulf %165, %163 : vector<8x256xf32>
    %167 = vector.extract_strided_slice %145 {offsets = [0, 1], sizes = [8, 1], strides = [1, 1]} : vector<8x2xf32> to vector<8x1xf32>
    %168 = vector.broadcast %167 : vector<8x1xf32> to vector<8x256xf32>
    %169 = arith.addf %166, %168 : vector<8x256xf32>
    %170 = vector.extract_strided_slice %142 {offsets = [0, 1], sizes = [8, 1], strides = [1, 1]} : vector<8x2xf32> to vector<8x1xf32>
    %171 = vector.broadcast %170 : vector<8x1xf32> to vector<8x256xf32>
    %172 = arith.mulf %171, %163 : vector<8x256xf32>
    %173 = vector.extract_strided_slice %148 {offsets = [0, 1], sizes = [8, 1], strides = [1, 1]} : vector<8x2xf32> to vector<8x1xf32>
    %174 = vector.broadcast %173 : vector<8x1xf32> to vector<8x256xf32>
    %175 = arith.addf %172, %174 : vector<8x256xf32>
    %176 = arith.maximumf %169, %175 : vector<8x256xf32>
    %c0_70 = arith.constant 0 : index
    %c0_71 = arith.constant 0 : index
    %177 = vector.load %arg10[%c0_70, %c0_71] : memref<8x72xf32, #tpu.memory_space<vmem>>, vector<8x72xf32>
    %c0_72 = arith.constant 0 : index
    %c0_73 = arith.constant 0 : index
    %178 = vector.load %arg11[%c0_72, %c0_73] : memref<8x1xf32, #tpu.memory_space<vmem>>, vector<8x1xf32>
    %c0_74 = arith.constant 0 : index
    %c0_75 = arith.constant 0 : index
    %179 = vector.load %arg12[%c0_74, %c0_75] : memref<8x1xf32, #tpu.memory_space<vmem>>, vector<8x1xf32>
    %c0_76 = arith.constant 0 : index
    %c0_77 = arith.constant 0 : index
    %180 = vector.load %arg13[%c0_76, %c0_77] : memref<8x8xf32, #tpu.memory_space<vmem>>, vector<8x8xf32>
    %c0_78 = arith.constant 0 : index
    %c0_79 = arith.constant 0 : index
    %181 = vector.load %arg14[%c0_78, %c0_79] : memref<8x1xf32, #tpu.memory_space<vmem>>, vector<8x1xf32>
    %c0_80 = arith.constant 0 : index
    %c0_81 = arith.constant 0 : index
    %182 = vector.load %arg15[%c0_80, %c0_81] : memref<32x8xf32, #tpu.memory_space<vmem>>, vector<32x8xf32>
    %c0_82 = arith.constant 0 : index
    %c0_83 = arith.constant 0 : index
    %183 = vector.load %arg16[%c0_82, %c0_83] : memref<32x1xf32, #tpu.memory_space<vmem>>, vector<32x1xf32>
    %cst_84 = arith.constant 0.000000e+00 : f32
    %184 = vector.broadcast %cst_84 : f32 to vector<8x17xf32>
    %cst_85 = arith.constant 0.000000e+00 : f32
    %185 = vector.broadcast %cst_85 : f32 to vector<8x17xf32>
    %186 = tpu.concatenate %184, %162, %185 in 1 : vector<8x17xf32>, vector<8x256xf32>, vector<8x17xf32> -> vector<8x290xf32>
    %187 = vector.extract_strided_slice %186 {offsets = [0, 0], sizes = [8, 256], strides = [1, 1]} : vector<8x290xf32> to vector<8x256xf32>
    %188 = vector.broadcast %1 : vector<1x256xf32> to vector<8x256xf32>
    %189 = arith.mulf %187, %188 : vector<8x256xf32>
    %c0_86 = arith.constant 0 : index
    %c0_87 = arith.constant 0 : index
    %190 = vector.load %arg19[%c0_86, %c0_87] : memref<72x512xf32, #tpu.memory_space<vmem>>, vector<8x256xf32>
    tpu.vector_store %arg19[%c0_86, %c0_87], %189 {strides = array<i32>} : memref<72x512xf32, #tpu.memory_space<vmem>>, vector<8x256xf32>,
    %191 = vector.extract_strided_slice %186 {offsets = [0, 1], sizes = [8, 256], strides = [1, 1]} : vector<8x290xf32> to vector<8x256xf32>
    %c8_88 = arith.constant 8 : index
    %c0_89 = arith.constant 0 : index
    %192 = vector.load %arg19[%c8_88, %c0_89] : memref<72x512xf32, #tpu.memory_space<vmem>>, vector<8x256xf32>
    tpu.vector_store %arg19[%c8_88, %c0_89], %191 {strides = array<i32>} : memref<72x512xf32, #tpu.memory_space<vmem>>, vector<8x256xf32>,
    %193 = vector.extract_strided_slice %186 {offsets = [0, 2], sizes = [8, 256], strides = [1, 1]} : vector<8x290xf32> to vector<8x256xf32>
    %194 = vector.broadcast %2 : vector<1x256xf32> to vector<8x256xf32>
    %195 = arith.mulf %193, %194 : vector<8x256xf32>
    %c16_90 = arith.constant 16 : index
    %c0_91 = arith.constant 0 : index
    %196 = vector.load %arg19[%c16_90, %c0_91] : memref<72x512xf32, #tpu.memory_space<vmem>>, vector<8x256xf32>
    tpu.vector_store %arg19[%c16_90, %c0_91], %195 {strides = array<i32>} : memref<72x512xf32, #tpu.memory_space<vmem>>, vector<8x256xf32>,
    %197 = vector.extract_strided_slice %186 {offsets = [0, 16], sizes = [8, 256], strides = [1, 1]} : vector<8x290xf32> to vector<8x256xf32>
    %198 = vector.broadcast %1 : vector<1x256xf32> to vector<8x256xf32>
    %199 = arith.mulf %197, %198 : vector<8x256xf32>
    %c24_92 = arith.constant 24 : index
    %c0_93 = arith.constant 0 : index
    %200 = vector.load %arg19[%c24_92, %c0_93] : memref<72x512xf32, #tpu.memory_space<vmem>>, vector<8x256xf32>
    tpu.vector_store %arg19[%c24_92, %c0_93], %199 {strides = array<i32>} : memref<72x512xf32, #tpu.memory_space<vmem>>, vector<8x256xf32>,
    %201 = vector.extract_strided_slice %186 {offsets = [0, 17], sizes = [8, 256], strides = [1, 1]} : vector<8x290xf32> to vector<8x256xf32>
    %c32_94 = arith.constant 32 : index
    %c0_95 = arith.constant 0 : index
    %202 = vector.load %arg19[%c32_94, %c0_95] : memref<72x512xf32, #tpu.memory_space<vmem>>, vector<8x256xf32>
    tpu.vector_store %arg19[%c32_94, %c0_95], %201 {strides = array<i32>} : memref<72x512xf32, #tpu.memory_space<vmem>>, vector<8x256xf32>,
    %203 = vector.extract_strided_slice %186 {offsets = [0, 18], sizes = [8, 256], strides = [1, 1]} : vector<8x290xf32> to vector<8x256xf32>
    %204 = vector.broadcast %2 : vector<1x256xf32> to vector<8x256xf32>
    %205 = arith.mulf %203, %204 : vector<8x256xf32>
    %c40_96 = arith.constant 40 : index
    %c0_97 = arith.constant 0 : index
    %206 = vector.load %arg19[%c40_96, %c0_97] : memref<72x512xf32, #tpu.memory_space<vmem>>, vector<8x256xf32>
    tpu.vector_store %arg19[%c40_96, %c0_97], %205 {strides = array<i32>} : memref<72x512xf32, #tpu.memory_space<vmem>>, vector<8x256xf32>,
    %207 = vector.extract_strided_slice %186 {offsets = [0, 32], sizes = [8, 256], strides = [1, 1]} : vector<8x290xf32> to vector<8x256xf32>
    %208 = vector.broadcast %1 : vector<1x256xf32> to vector<8x256xf32>
    %209 = arith.mulf %207, %208 : vector<8x256xf32>
    %c48_98 = arith.constant 48 : index
    %c0_99 = arith.constant 0 : index
    %210 = vector.load %arg19[%c48_98, %c0_99] : memref<72x512xf32, #tpu.memory_space<vmem>>, vector<8x256xf32>
    tpu.vector_store %arg19[%c48_98, %c0_99], %209 {strides = array<i32>} : memref<72x512xf32, #tpu.memory_space<vmem>>, vector<8x256xf32>,
    %211 = vector.extract_strided_slice %186 {offsets = [0, 33], sizes = [8, 256], strides = [1, 1]} : vector<8x290xf32> to vector<8x256xf32>
    %c56_100 = arith.constant 56 : index
    %c0_101 = arith.constant 0 : index
    %212 = vector.load %arg19[%c56_100, %c0_101] : memref<72x512xf32, #tpu.memory_space<vmem>>, vector<8x256xf32>
    tpu.vector_store %arg19[%c56_100, %c0_101], %211 {strides = array<i32>} : memref<72x512xf32, #tpu.memory_space<vmem>>, vector<8x256xf32>,
    %213 = vector.extract_strided_slice %186 {offsets = [0, 34], sizes = [8, 256], strides = [1, 1]} : vector<8x290xf32> to vector<8x256xf32>
    %214 = vector.broadcast %2 : vector<1x256xf32> to vector<8x256xf32>
    %215 = arith.mulf %213, %214 : vector<8x256xf32>
    %c64_102 = arith.constant 64 : index
    %c0_103 = arith.constant 0 : index
    %216 = vector.load %arg19[%c64_102, %c0_103] : memref<72x512xf32, #tpu.memory_space<vmem>>, vector<8x256xf32>
    tpu.vector_store %arg19[%c64_102, %c0_103], %215 {strides = array<i32>} : memref<72x512xf32, #tpu.memory_space<vmem>>, vector<8x256xf32>,
    %cst_104 = arith.constant 0.000000e+00 : f32
    %217 = vector.broadcast %cst_104 : f32 to vector<8x17xf32>
    %cst_105 = arith.constant 0.000000e+00 : f32
    %218 = vector.broadcast %cst_105 : f32 to vector<8x17xf32>
    %219 = tpu.concatenate %217, %176, %218 in 1 : vector<8x17xf32>, vector<8x256xf32>, vector<8x17xf32> -> vector<8x290xf32>
    %220 = vector.extract_strided_slice %219 {offsets = [0, 0], sizes = [8, 256], strides = [1, 1]} : vector<8x290xf32> to vector<8x256xf32>
    %221 = vector.broadcast %1 : vector<1x256xf32> to vector<8x256xf32>
    %222 = arith.mulf %220, %221 : vector<8x256xf32>
    %c0_106 = arith.constant 0 : index
    %c256_107 = arith.constant 256 : index
    %223 = vector.load %arg19[%c0_106, %c256_107] : memref<72x512xf32, #tpu.memory_space<vmem>>, vector<8x256xf32>
    tpu.vector_store %arg19[%c0_106, %c256_107], %222 {strides = array<i32>} : memref<72x512xf32, #tpu.memory_space<vmem>>, vector<8x256xf32>,
    %224 = vector.extract_strided_slice %219 {offsets = [0, 1], sizes = [8, 256], strides = [1, 1]} : vector<8x290xf32> to vector<8x256xf32>
    %c8_108 = arith.constant 8 : index
    %c256_109 = arith.constant 256 : index
    %225 = vector.load %arg19[%c8_108, %c256_109] : memref<72x512xf32, #tpu.memory_space<vmem>>, vector<8x256xf32>
    tpu.vector_store %arg19[%c8_108, %c256_109], %224 {strides = array<i32>} : memref<72x512xf32, #tpu.memory_space<vmem>>, vector<8x256xf32>,
    %226 = vector.extract_strided_slice %219 {offsets = [0, 2], sizes = [8, 256], strides = [1, 1]} : vector<8x290xf32> to vector<8x256xf32>
    %227 = vector.broadcast %2 : vector<1x256xf32> to vector<8x256xf32>
    %228 = arith.mulf %226, %227 : vector<8x256xf32>
    %c16_110 = arith.constant 16 : index
    %c256_111 = arith.constant 256 : index
    %229 = vector.load %arg19[%c16_110, %c256_111] : memref<72x512xf32, #tpu.memory_space<vmem>>, vector<8x256xf32>
    tpu.vector_store %arg19[%c16_110, %c256_111], %228 {strides = array<i32>} : memref<72x512xf32, #tpu.memory_space<vmem>>, vector<8x256xf32>,
    %230 = vector.extract_strided_slice %219 {offsets = [0, 16], sizes = [8, 256], strides = [1, 1]} : vector<8x290xf32> to vector<8x256xf32>
    %231 = vector.broadcast %1 : vector<1x256xf32> to vector<8x256xf32>
    %232 = arith.mulf %230, %231 : vector<8x256xf32>
    %c24_112 = arith.constant 24 : index
    %c256_113 = arith.constant 256 : index
    %233 = vector.load %arg19[%c24_112, %c256_113] : memref<72x512xf32, #tpu.memory_space<vmem>>, vector<8x256xf32>
    tpu.vector_store %arg19[%c24_112, %c256_113], %232 {strides = array<i32>} : memref<72x512xf32, #tpu.memory_space<vmem>>, vector<8x256xf32>,
    %234 = vector.extract_strided_slice %219 {offsets = [0, 17], sizes = [8, 256], strides = [1, 1]} : vector<8x290xf32> to vector<8x256xf32>
    %c32_114 = arith.constant 32 : index
    %c256_115 = arith.constant 256 : index
    %235 = vector.load %arg19[%c32_114, %c256_115] : memref<72x512xf32, #tpu.memory_space<vmem>>, vector<8x256xf32>
    tpu.vector_store %arg19[%c32_114, %c256_115], %234 {strides = array<i32>} : memref<72x512xf32, #tpu.memory_space<vmem>>, vector<8x256xf32>,
    %236 = vector.extract_strided_slice %219 {offsets = [0, 18], sizes = [8, 256], strides = [1, 1]} : vector<8x290xf32> to vector<8x256xf32>
    %237 = vector.broadcast %2 : vector<1x256xf32> to vector<8x256xf32>
    %238 = arith.mulf %236, %237 : vector<8x256xf32>
    %c40_116 = arith.constant 40 : index
    %c256_117 = arith.constant 256 : index
    %239 = vector.load %arg19[%c40_116, %c256_117] : memref<72x512xf32, #tpu.memory_space<vmem>>, vector<8x256xf32>
    tpu.vector_store %arg19[%c40_116, %c256_117], %238 {strides = array<i32>} : memref<72x512xf32, #tpu.memory_space<vmem>>, vector<8x256xf32>,
    %240 = vector.extract_strided_slice %219 {offsets = [0, 32], sizes = [8, 256], strides = [1, 1]} : vector<8x290xf32> to vector<8x256xf32>
    %241 = vector.broadcast %1 : vector<1x256xf32> to vector<8x256xf32>
    %242 = arith.mulf %240, %241 : vector<8x256xf32>
    %c48_118 = arith.constant 48 : index
    %c256_119 = arith.constant 256 : index
    %243 = vector.load %arg19[%c48_118, %c256_119] : memref<72x512xf32, #tpu.memory_space<vmem>>, vector<8x256xf32>
    tpu.vector_store %arg19[%c48_118, %c256_119], %242 {strides = array<i32>} : memref<72x512xf32, #tpu.memory_space<vmem>>, vector<8x256xf32>,
    %244 = vector.extract_strided_slice %219 {offsets = [0, 33], sizes = [8, 256], strides = [1, 1]} : vector<8x290xf32> to vector<8x256xf32>
    %c56_120 = arith.constant 56 : index
    %c256_121 = arith.constant 256 : index
    %245 = vector.load %arg19[%c56_120, %c256_121] : memref<72x512xf32, #tpu.memory_space<vmem>>, vector<8x256xf32>
    tpu.vector_store %arg19[%c56_120, %c256_121], %244 {strides = array<i32>} : memref<72x512xf32, #tpu.memory_space<vmem>>, vector<8x256xf32>,
    %246 = vector.extract_strided_slice %219 {offsets = [0, 34], sizes = [8, 256], strides = [1, 1]} : vector<8x290xf32> to vector<8x256xf32>
    %247 = vector.broadcast %2 : vector<1x256xf32> to vector<8x256xf32>
    %248 = arith.mulf %246, %247 : vector<8x256xf32>
    %c64_122 = arith.constant 64 : index
    %c256_123 = arith.constant 256 : index
    %249 = vector.load %arg19[%c64_122, %c256_123] : memref<72x512xf32, #tpu.memory_space<vmem>>, vector<8x256xf32>
    tpu.vector_store %arg19[%c64_122, %c256_123], %248 {strides = array<i32>} : memref<72x512xf32, #tpu.memory_space<vmem>>, vector<8x256xf32>,
    %c0_124 = arith.constant 0 : index
    %c0_125 = arith.constant 0 : index
    %250 = vector.load %arg19[%c0_124, %c0_125] : memref<72x512xf32, #tpu.memory_space<vmem>>, vector<72x512xf32>
    %cst_126 = arith.constant dense<0.000000e+00> : vector<8x512xf32>
    %251 = tpu.matmul %177, %250, %cst_126 {dimension_numbers = #tpu.dot_dimension_numbers<[1], [0], [0], [1], [0, 0, 1, 1], [], []>} : vector<8x72xf32>, vector<72x512xf32>, vector<8x512xf32> -> vector<8x512xf32>
    %252 = vector.extract_strided_slice %251 {offsets = [0, 0], sizes = [8, 256], strides = [1, 1]} : vector<8x512xf32> to vector<8x256xf32>
    %cst_127 = arith.constant dense<0.000000e+00> : vector<8xf32>
    %253 = vector.multi_reduction <add>, %252, %cst_127 [1] : vector<8x256xf32> to vector<8xf32>
    %254 = vector.shape_cast %253 : vector<8xf32> to vector<8x1xf32>
    %255 = arith.mulf %252, %252 : vector<8x256xf32>
    %cst_128 = arith.constant dense<0.000000e+00> : vector<8xf32>
    %256 = vector.multi_reduction <add>, %255, %cst_128 [1] : vector<8x256xf32> to vector<8xf32>
    %257 = vector.shape_cast %256 : vector<8xf32> to vector<8x1xf32>
    %258 = vector.extract_strided_slice %251 {offsets = [0, 256], sizes = [8, 256], strides = [1, 1]} : vector<8x512xf32> to vector<8x256xf32>
    %cst_129 = arith.constant dense<0.000000e+00> : vector<8xf32>
    %259 = vector.multi_reduction <add>, %258, %cst_129 [1] : vector<8x256xf32> to vector<8xf32>
    %260 = vector.shape_cast %259 : vector<8xf32> to vector<8x1xf32>
    %261 = arith.mulf %258, %258 : vector<8x256xf32>
    %cst_130 = arith.constant dense<0.000000e+00> : vector<8xf32>
    %262 = vector.multi_reduction <add>, %261, %cst_130 [1] : vector<8x256xf32> to vector<8xf32>
    %263 = vector.shape_cast %262 : vector<8xf32> to vector<8x1xf32>
    %264 = tpu.concatenate %254, %260 in 1 : vector<8x1xf32>, vector<8x1xf32> -> vector<8x2xf32>
    %265 = tpu.concatenate %257, %263 in 1 : vector<8x1xf32>, vector<8x1xf32> -> vector<8x2xf32>
    %cst_131 = arith.constant dense<0.000000e+00> : vector<8xf32>
    %266 = vector.multi_reduction <add>, %264, %cst_131 [1] : vector<8x2xf32> to vector<8xf32>
    %267 = vector.shape_cast %266 : vector<8xf32> to vector<8x1xf32>
    %cst_132 = arith.constant 5.120000e+02 : f32
    %268 = vector.broadcast %cst_132 : f32 to vector<8x1xf32>
    %269 = arith.divf %267, %268 : vector<8x1xf32>
    %cst_133 = arith.constant dense<0.000000e+00> : vector<8xf32>
    %270 = vector.multi_reduction <add>, %265, %cst_133 [1] : vector<8x2xf32> to vector<8xf32>
    %271 = vector.shape_cast %270 : vector<8xf32> to vector<8x1xf32>
    %cst_134 = arith.constant 5.120000e+02 : f32
    %272 = vector.broadcast %cst_134 : f32 to vector<8x1xf32>
    %273 = arith.divf %271, %272 : vector<8x1xf32>
    %274 = arith.mulf %269, %269 : vector<8x1xf32>
    %275 = arith.subf %273, %274 : vector<8x1xf32>
    %cst_135 = arith.constant 9.99999974E-6 : f32
    %276 = vector.broadcast %cst_135 : f32 to vector<8x1xf32>
    %277 = arith.addf %275, %276 : vector<8x1xf32>
    %278 = math.rsqrt %277 : vector<8x1xf32>
    %279 = arith.mulf %178, %278 : vector<8x1xf32>
    %280 = arith.mulf %269, %279 : vector<8x1xf32>
    %281 = arith.subf %179, %280 : vector<8x1xf32>
    %cst_136 = arith.constant 2.560000e+02 : f32
    %282 = vector.broadcast %cst_136 : f32 to vector<8x2xf32>
    %283 = arith.divf %264, %282 : vector<8x2xf32>
    %284 = vector.broadcast %279 : vector<8x1xf32> to vector<8x2xf32>
    %285 = arith.mulf %283, %284 : vector<8x2xf32>
    %286 = vector.broadcast %281 : vector<8x1xf32> to vector<8x2xf32>
    %287 = arith.addf %285, %286 : vector<8x2xf32>
    %cst_137 = arith.constant dense<0.000000e+00> : vector<8x2xf32>
    %288 = tpu.matmul %180, %287, %cst_137 {dimension_numbers = #tpu.dot_dimension_numbers<[1], [0], [0], [1], [0, 0, 1, 1], [], []>} : vector<8x8xf32>, vector<8x2xf32>, vector<8x2xf32> -> vector<8x2xf32>
    %289 = vector.broadcast %181 : vector<8x1xf32> to vector<8x2xf32>
    %290 = arith.addf %288, %289 : vector<8x2xf32>
    %cst_138 = arith.constant 0.000000e+00 : f32
    %291 = vector.broadcast %cst_138 : f32 to vector<8x2xf32>
    %292 = arith.maximumf %290, %291 : vector<8x2xf32>
    %cst_139 = arith.constant dense<0.000000e+00> : vector<32x2xf32>
    %293 = tpu.matmul %182, %292, %cst_139 {dimension_numbers = #tpu.dot_dimension_numbers<[1], [0], [0], [1], [0, 0, 1, 1], [], []>} : vector<32x8xf32>, vector<8x2xf32>, vector<32x2xf32> -> vector<32x2xf32>
    %294 = vector.broadcast %183 : vector<32x1xf32> to vector<32x2xf32>
    %295 = arith.addf %293, %294 : vector<32x2xf32>
    %cst_140 = arith.constant 5.000000e-01 : f32
    %296 = vector.broadcast %cst_140 : f32 to vector<32x2xf32>
    %297 = arith.mulf %296, %295 : vector<32x2xf32>
    %298 = math.tanh %297 : vector<32x2xf32>
    %299 = vector.extract_strided_slice %298 {offsets = [0, 0], sizes = [8, 2], strides = [1, 1]} : vector<32x2xf32> to vector<8x2xf32>
    %cst_141 = arith.constant 1.000000e+00 : f32
    %300 = vector.broadcast %cst_141 : f32 to vector<8x2xf32>
    %301 = arith.addf %299, %300 : vector<8x2xf32>
    %302 = vector.extract_strided_slice %298 {offsets = [8, 0], sizes = [8, 2], strides = [1, 1]} : vector<32x2xf32> to vector<8x2xf32>
    %303 = vector.extract_strided_slice %298 {offsets = [16, 0], sizes = [8, 2], strides = [1, 1]} : vector<32x2xf32> to vector<8x2xf32>
    %cst_142 = arith.constant 5.000000e-01 : f32
    %304 = vector.broadcast %cst_142 : f32 to vector<8x2xf32>
    %305 = arith.mulf %303, %304 : vector<8x2xf32>
    %306 = vector.extract_strided_slice %298 {offsets = [24, 0], sizes = [8, 2], strides = [1, 1]} : vector<32x2xf32> to vector<8x2xf32>
    %cst_143 = arith.constant 5.000000e-01 : f32
    %307 = vector.broadcast %cst_143 : f32 to vector<8x2xf32>
    %308 = arith.mulf %306, %307 : vector<8x2xf32>
    %309 = vector.broadcast %279 : vector<8x1xf32> to vector<8x2xf32>
    %310 = arith.mulf %301, %309 : vector<8x2xf32>
    %311 = vector.broadcast %279 : vector<8x1xf32> to vector<8x2xf32>
    %312 = arith.mulf %302, %311 : vector<8x2xf32>
    %313 = vector.broadcast %281 : vector<8x1xf32> to vector<8x2xf32>
    %314 = arith.mulf %301, %313 : vector<8x2xf32>
    %315 = arith.addf %314, %305 : vector<8x2xf32>
    %316 = vector.broadcast %281 : vector<8x1xf32> to vector<8x2xf32>
    %317 = arith.mulf %302, %316 : vector<8x2xf32>
    %318 = arith.addf %317, %308 : vector<8x2xf32>
    %319 = vector.extract_strided_slice %251 {offsets = [0, 0], sizes = [8, 256], strides = [1, 1]} : vector<8x512xf32> to vector<8x256xf32>
    %320 = vector.extract_strided_slice %310 {offsets = [0, 0], sizes = [8, 1], strides = [1, 1]} : vector<8x2xf32> to vector<8x1xf32>
    %321 = vector.broadcast %320 : vector<8x1xf32> to vector<8x256xf32>
    %322 = arith.mulf %321, %319 : vector<8x256xf32>
    %323 = vector.extract_strided_slice %315 {offsets = [0, 0], sizes = [8, 1], strides = [1, 1]} : vector<8x2xf32> to vector<8x1xf32>
    %324 = vector.broadcast %323 : vector<8x1xf32> to vector<8x256xf32>
    %325 = arith.addf %322, %324 : vector<8x256xf32>
    %326 = vector.extract_strided_slice %312 {offsets = [0, 0], sizes = [8, 1], strides = [1, 1]} : vector<8x2xf32> to vector<8x1xf32>
    %327 = vector.broadcast %326 : vector<8x1xf32> to vector<8x256xf32>
    %328 = arith.mulf %327, %319 : vector<8x256xf32>
    %329 = vector.extract_strided_slice %318 {offsets = [0, 0], sizes = [8, 1], strides = [1, 1]} : vector<8x2xf32> to vector<8x1xf32>
    %330 = vector.broadcast %329 : vector<8x1xf32> to vector<8x256xf32>
    %331 = arith.addf %328, %330 : vector<8x256xf32>
    %332 = arith.maximumf %325, %331 : vector<8x256xf32>
    %333 = vector.extract_strided_slice %251 {offsets = [0, 256], sizes = [8, 256], strides = [1, 1]} : vector<8x512xf32> to vector<8x256xf32>
    %334 = vector.extract_strided_slice %310 {offsets = [0, 1], sizes = [8, 1], strides = [1, 1]} : vector<8x2xf32> to vector<8x1xf32>
    %335 = vector.broadcast %334 : vector<8x1xf32> to vector<8x256xf32>
    %336 = arith.mulf %335, %333 : vector<8x256xf32>
    %337 = vector.extract_strided_slice %315 {offsets = [0, 1], sizes = [8, 1], strides = [1, 1]} : vector<8x2xf32> to vector<8x1xf32>
    %338 = vector.broadcast %337 : vector<8x1xf32> to vector<8x256xf32>
    %339 = arith.addf %336, %338 : vector<8x256xf32>
    %340 = vector.extract_strided_slice %312 {offsets = [0, 1], sizes = [8, 1], strides = [1, 1]} : vector<8x2xf32> to vector<8x1xf32>
    %341 = vector.broadcast %340 : vector<8x1xf32> to vector<8x256xf32>
    %342 = arith.mulf %341, %333 : vector<8x256xf32>
    %343 = vector.extract_strided_slice %318 {offsets = [0, 1], sizes = [8, 1], strides = [1, 1]} : vector<8x2xf32> to vector<8x1xf32>
    %344 = vector.broadcast %343 : vector<8x1xf32> to vector<8x256xf32>
    %345 = arith.addf %342, %344 : vector<8x256xf32>
    %346 = arith.maximumf %339, %345 : vector<8x256xf32>
    %c0_144 = arith.constant 0 : index
    %c0_145 = arith.constant 0 : index
    %c0_146 = arith.constant 0 : index
    %347 = vector.load %arg17[%c0_144, %c0_145, %c0_146] : memref<2x8x256xf32, #tpu.memory_space<vmem>>, vector<1x8x256xf32>
    %348 = vector.shape_cast %347 : vector<1x8x256xf32> to vector<8x256xf32>
    %349 = vector.shape_cast %332 : vector<8x256xf32> to vector<1x8x256xf32>
    tpu.vector_store %arg17[%c0_144, %c0_145, %c0_146], %349 {strides = array<i32>} : memref<2x8x256xf32, #tpu.memory_space<vmem>>, vector<1x8x256xf32>,
    %c1_147 = arith.constant 1 : index
    %c0_148 = arith.constant 0 : index
    %c0_149 = arith.constant 0 : index
    %350 = vector.load %arg17[%c1_147, %c0_148, %c0_149] : memref<2x8x256xf32, #tpu.memory_space<vmem>>, vector<1x8x256xf32>
    %351 = vector.shape_cast %350 : vector<1x8x256xf32> to vector<8x256xf32>
    %352 = vector.shape_cast %346 : vector<8x256xf32> to vector<1x8x256xf32>
    tpu.vector_store %arg17[%c1_147, %c0_148, %c0_149], %352 {strides = array<i32>} : memref<2x8x256xf32, #tpu.memory_space<vmem>>, vector<1x8x256xf32>,
    return
  }
  func.func @transform_0(%arg0: i32) -> (i32, i32, i32) {
    %c0_i32 = arith.constant 0 : i32
    %c0_i32_0 = arith.constant 0 : i32
    %c0_i32_1 = arith.constant 0 : i32
    %c0_i32_2 = arith.constant 0 : i32
    return %c0_i32, %c0_i32_0, %c0_i32_1 : i32, i32, i32
  }
  func.func @transform_1(%arg0: i32) -> (i32, i32) {
    %c0_i32 = arith.constant 0 : i32
    %c0_i32_0 = arith.constant 0 : i32
    %c0_i32_1 = arith.constant 0 : i32
    return %c0_i32, %c0_i32_0 : i32, i32
  }
  func.func @transform_2(%arg0: i32) -> (i32, i32) {
    %c0_i32 = arith.constant 0 : i32
    %c0_i32_0 = arith.constant 0 : i32
    %c0_i32_1 = arith.constant 0 : i32
    return %c0_i32, %c0_i32_0 : i32, i32
  }
  func.func @transform_3(%arg0: i32) -> (i32, i32) {
    %c0_i32 = arith.constant 0 : i32
    %c0_i32_0 = arith.constant 0 : i32
    %c0_i32_1 = arith.constant 0 : i32
    return %c0_i32, %c0_i32_0 : i32, i32
  }
  func.func @transform_4(%arg0: i32) -> (i32, i32) {
    %c0_i32 = arith.constant 0 : i32
    %c0_i32_0 = arith.constant 0 : i32
    %c0_i32_1 = arith.constant 0 : i32
    return %c0_i32, %c0_i32_0 : i32, i32
  }
  func.func @transform_5(%arg0: i32) -> (i32, i32) {
    %c0_i32 = arith.constant 0 : i32
    %c0_i32_0 = arith.constant 0 : i32
    %c0_i32_1 = arith.constant 0 : i32
    return %c0_i32, %c0_i32_0 : i32, i32
  }
  func.func @transform_6(%arg0: i32) -> (i32, i32) {
    %c0_i32 = arith.constant 0 : i32
    %c0_i32_0 = arith.constant 0 : i32
    %c0_i32_1 = arith.constant 0 : i32
    return %c0_i32, %c0_i32_0 : i32, i32
  }
  func.func @transform_7(%arg0: i32) -> (i32, i32) {
    %c0_i32 = arith.constant 0 : i32
    %c0_i32_0 = arith.constant 0 : i32
    %c0_i32_1 = arith.constant 0 : i32
    return %c0_i32, %c0_i32_0 : i32, i32
  }
  func.func @transform_8(%arg0: i32) -> (i32, i32) {
    %c0_i32 = arith.constant 0 : i32
    %c0_i32_0 = arith.constant 0 : i32
    %c0_i32_1 = arith.constant 0 : i32
    return %c0_i32, %c0_i32_0 : i32, i32
  }
  func.func @transform_9(%arg0: i32) -> (i32, i32) {
    %c0_i32 = arith.constant 0 : i32
    %c0_i32_0 = arith.constant 0 : i32
    %c0_i32_1 = arith.constant 0 : i32
    return %c0_i32, %c0_i32_0 : i32, i32
  }
  func.func @transform_10(%arg0: i32) -> (i32, i32) {
    %c0_i32 = arith.constant 0 : i32
    %c0_i32_0 = arith.constant 0 : i32
    %c0_i32_1 = arith.constant 0 : i32
    return %c0_i32, %c0_i32_0 : i32, i32
  }
  func.func @transform_11(%arg0: i32) -> (i32, i32) {
    %c0_i32 = arith.constant 0 : i32
    %c0_i32_0 = arith.constant 0 : i32
    %c0_i32_1 = arith.constant 0 : i32
    return %c0_i32, %c0_i32_0 : i32, i32
  }
  func.func @transform_12(%arg0: i32) -> (i32, i32) {
    %c0_i32 = arith.constant 0 : i32
    %c0_i32_0 = arith.constant 0 : i32
    %c0_i32_1 = arith.constant 0 : i32
    return %c0_i32, %c0_i32_0 : i32, i32
  }
  func.func @transform_13(%arg0: i32) -> (i32, i32) {
    %c0_i32 = arith.constant 0 : i32
    %c0_i32_0 = arith.constant 0 : i32
    %c0_i32_1 = arith.constant 0 : i32
    return %c0_i32, %c0_i32_0 : i32, i32
  }
  func.func @transform_14(%arg0: i32) -> (i32, i32) {
    %c0_i32 = arith.constant 0 : i32
    %c0_i32_0 = arith.constant 0 : i32
    %c0_i32_1 = arith.constant 0 : i32
    return %c0_i32, %c0_i32_0 : i32, i32
  }
  func.func @transform_15(%arg0: i32) -> (i32, i32) {
    %c0_i32 = arith.constant 0 : i32
    %c0_i32_0 = arith.constant 0 : i32
    %c0_i32_1 = arith.constant 0 : i32
    return %c0_i32, %c0_i32_0 : i32, i32
  }
  func.func @transform_16(%arg0: i32) -> (i32, i32, i32) {
    %c0_i32 = arith.constant 0 : i32
    %c0_i32_0 = arith.constant 0 : i32
    %c0_i32_1 = arith.constant 0 : i32
    %c0_i32_2 = arith.constant 0 : i32
    return %c0_i32, %c0_i32_0, %c0_i32_1 : i32, i32, i32
  }
}

</mosaic_0001>

<llo_original>
// kernel: conv_block_forward.1
$region0: #{conv_block_forward.1}
  #allocation0 [shape = 'u32[]', space=smem, size = 0x4, offset = 0x4, fixed_abs, tag = 'smem constant byte address 0x4 - core index']
  #allocation1 [shape = 'u32[144,128]{1,0:T(1,128)}', space=vmem, size = 0x12000, scoped, tag = 'internal scratch']
  #allocation2 [shape = 'f32[72,512]{1,0:T(8,128)}', space=vmem, size = 0x24000, scoped, tag = 'scratch operand']
  #allocation3 [shape = 'f32[72,512]{1,0:T(8,128)}', space=vmem, size = 0x24000, scoped, tag = 'scratch operand']
  %s0 = inlined_call_operand.vmem [shape: f32[2,8,256], index: 0, kind: input, shape index: {}]
  %s1 = inlined_call_operand.vmem [shape: f32[2,256], index: 1, kind: input, shape index: {}]
  %s2 = inlined_call_operand.vmem [shape: f32[8,72], index: 2, kind: input, shape index: {}]
  %s3 = inlined_call_operand.vmem [shape: f32[8,1], index: 3, kind: input, shape index: {}]
  %s4 = inlined_call_operand.vmem [shape: f32[8,1], index: 4, kind: input, shape index: {}]
  %s5 = inlined_call_operand.vmem [shape: f32[8,8], index: 5, kind: input, shape index: {}]
  %s6 = inlined_call_operand.vmem [shape: f32[8,1], index: 6, kind: input, shape index: {}]
  %s7 = inlined_call_operand.vmem [shape: f32[32,8], index: 7, kind: input, shape index: {}]
  %s8 = inlined_call_operand.vmem [shape: f32[32,1], index: 8, kind: input, shape index: {}]
  %s9 = inlined_call_operand.vmem [shape: f32[8,72], index: 9, kind: input, shape index: {}]
  %s10 = inlined_call_operand.vmem [shape: f32[8,1], index: 10, kind: input, shape index: {}]
  %s11 = inlined_call_operand.vmem [shape: f32[8,1], index: 11, kind: input, shape index: {}]
  %s12 = inlined_call_operand.vmem [shape: f32[8,8], index: 12, kind: input, shape index: {}]
  %s13 = inlined_call_operand.vmem [shape: f32[8,1], index: 13, kind: input, shape index: {}]
  %s14 = inlined_call_operand.vmem [shape: f32[32,8], index: 14, kind: input, shape index: {}]
  %s15 = inlined_call_operand.vmem [shape: f32[32,1], index: 15, kind: input, shape index: {}]
  %s16 = inlined_call_operand.vmem [shape: f32[2,8,256], index: 16, kind: output, shape index: {}]
  %s17 = sld [smem:[#allocation0]]
  $region74: #{conv_block_forward.1} parent=0
    _
  %s19 = ssub.s32 1, %s17
  %s20 = scalar_select 0, %s19, %s17
  // Predicated region
  $region2: #{conv_block_forward.1} parent=0 // pred_check
    _
  $region3: #{conv_block_forward.1} parent=0 // pred_check_branch
    %22 = sbr.rel (0) target = $region5
  $region4: #{conv_block_forward.1} parent=0 // pred_region
    _
  $region5: #{conv_block_forward.1} parent=0 // pred_fallthru
    _
  // Predicated region
  $region6: #{conv_block_forward.1} parent=0 // pred_check
    _
  $region7: #{conv_block_forward.1} parent=0 // pred_check_branch
    %24 = sbr.rel (0) target = $region9
  $region8: #{conv_block_forward.1} parent=0 // pred_region
    _
  $region9: #{conv_block_forward.1} parent=0 // pred_fallthru
    _
  // Predicated region
  $region10: #{conv_block_forward.1} parent=0 // pred_check
    _
  $region11: #{conv_block_forward.1} parent=0 // pred_check_branch
    %26 = sbr.rel (0) target = $region13
  $region12: #{conv_block_forward.1} parent=0 // pred_region
    _
  $region13: #{conv_block_forward.1} parent=0 // pred_fallthru
    _
  // Predicated region
  $region14: #{conv_block_forward.1} parent=0 // pred_check
    _
  $region15: #{conv_block_forward.1} parent=0 // pred_check_branch
    %28 = sbr.rel (0) target = $region17
  $region16: #{conv_block_forward.1} parent=0 // pred_region
    _
  $region17: #{conv_block_forward.1} parent=0 // pred_fallthru
    _
  // Predicated region
  $region18: #{conv_block_forward.1} parent=0 // pred_check
    _
  $region19: #{conv_block_forward.1} parent=0 // pred_check_branch
    %30 = sbr.rel (0) target = $region21
  $region20: #{conv_block_forward.1} parent=0 // pred_region
    _
  $region21: #{conv_block_forward.1} parent=0 // pred_fallthru
    _
  // Predicated region
  $region22: #{conv_block_forward.1} parent=0 // pred_check
    _
  $region23: #{conv_block_forward.1} parent=0 // pred_check_branch
    %32 = sbr.rel (0) target = $region25
  $region24: #{conv_block_forward.1} parent=0 // pred_region
    _
  $region25: #{conv_block_forward.1} parent=0 // pred_fallthru
    _
  // Predicated region
  $region26: #{conv_block_forward.1} parent=0 // pred_check
    _
  $region27: #{conv_block_forward.1} parent=0 // pred_check_branch
    %34 = sbr.rel (0) target = $region29
  $region28: #{conv_block_forward.1} parent=0 // pred_region
    _
  $region29: #{conv_block_forward.1} parent=0 // pred_fallthru
    _
  // Predicated region
  $region30: #{conv_block_forward.1} parent=0 // pred_check
    _
  $region31: #{conv_block_forward.1} parent=0 // pred_check_branch
    %36 = sbr.rel (0) target = $region33
  $region32: #{conv_block_forward.1} parent=0 // pred_region
    _
  $region33: #{conv_block_forward.1} parent=0 // pred_fallthru
    _
  // Predicated region
  $region34: #{conv_block_forward.1} parent=0 // pred_check
    _
  $region35: #{conv_block_forward.1} parent=0 // pred_check_branch
    %38 = sbr.rel (0) target = $region37
  $region36: #{conv_block_forward.1} parent=0 // pred_region
    _
  $region37: #{conv_block_forward.1} parent=0 // pred_fallthru
    _
  // Predicated region
  $region38: #{conv_block_forward.1} parent=0 // pred_check
    _
  $region39: #{conv_block_forward.1} parent=0 // pred_check_branch
    %40 = sbr.rel (0) target = $region41
  $region40: #{conv_block_forward.1} parent=0 // pred_region
    _
  $region41: #{conv_block_forward.1} parent=0 // pred_fallthru
    _
  // Predicated region
  $region42: #{conv_block_forward.1} parent=0 // pred_check
    _
  $region43: #{conv_block_forward.1} parent=0 // pred_check_branch
    %42 = sbr.rel (0) target = $region45
  $region44: #{conv_block_forward.1} parent=0 // pred_region
    _
  $region45: #{conv_block_forward.1} parent=0 // pred_fallthru
    _
  // Predicated region
  $region46: #{conv_block_forward.1} parent=0 // pred_check
    _
  $region47: #{conv_block_forward.1} parent=0 // pred_check_branch
    %44 = sbr.rel (0) target = $region49
  $region48: #{conv_block_forward.1} parent=0 // pred_region
    _
  $region49: #{conv_block_forward.1} parent=0 // pred_fallthru
    _
  // Predicated region
  $region50: #{conv_block_forward.1} parent=0 // pred_check
    _
  $region51: #{conv_block_forward.1} parent=0 // pred_check_branch
    %46 = sbr.rel (0) target = $region53
  $region52: #{conv_block_forward.1} parent=0 // pred_region
    _
  $region53: #{conv_block_forward.1} parent=0 // pred_fallthru
    _
  // Predicated region
  $region54: #{conv_block_forward.1} parent=0 // pred_check
    _
  $region55: #{conv_block_forward.1} parent=0 // pred_check_branch
    %48 = sbr.rel (0) target = $region57
  $region56: #{conv_block_forward.1} parent=0 // pred_region
    _
  $region57: #{conv_block_forward.1} parent=0 // pred_fallthru
    _
  // Predicated region
  $region58: #{conv_block_forward.1} parent=0 // pred_check
    _
  $region59: #{conv_block_forward.1} parent=0 // pred_check_branch
    %50 = sbr.rel (0) target = $region61
  $region60: #{conv_block_forward.1} parent=0 // pred_region
    _
  $region61: #{conv_block_forward.1} parent=0 // pred_fallthru
    _
  // Predicated region
  $region62: #{conv_block_forward.1} parent=0 // pred_check
    _
  $region63: #{conv_block_forward.1} parent=0 // pred_check_branch
    %52 = sbr.rel (0) target = $region65
  $region64: #{conv_block_forward.1} parent=0 // pred_region
    _
  $region65: #{conv_block_forward.1} parent=0 // pred_fallthru
    _
  %v53 = vld [vmem:[%s1] sm:$0xf]
  %v54 = vld [vmem:[%s0] sm:$0xff]
  %v55 = vld [vmem:[%s0 + $0x8] sm:$0xff]
  %s56 = scalar_lea.vmem %s0, 16
  %v57 = vld [vmem:[%s56] sm:$0xff]
  %v58 = vld [vmem:[%s56 + $0x8] sm:$0xff]
  %v59 = vld [vmem:[%s2] sm:$0xff]
  %v60 = vld [vmem:[%s3] sm:$0xff]
  %v61 = vld [vmem:[%s4] sm:$0xff]
  %v62 = vld [vmem:[%s5] sm:$0xff]
  %v63 = vld [vmem:[%s6] sm:$0xff]
  %v64 = vld [vmem:[%s7] sm:$0xff]
  %v65 = vld [vmem:[%s7 + $0x8] sm:$0xff]
  %v66 = vld [vmem:[%s7 + $0x10] sm:$0xff]
  %v67 = vld [vmem:[%s7 + $0x18] sm:$0xff]
  %v68 = vld [vmem:[%s8] sm:$0xff]
  %v69 = vld [vmem:[%s8 + $0x8] sm:$0xff]
  %v70 = vld [vmem:[%s8 + $0x10] sm:$0xff]
  %v71 = vld [vmem:[%s8 + $0x18] sm:$0xff]
  %74 = vrot.lane.b32.xlu0 %v54, 17
  %v75 = vpop.permute.xlu0 %74
  %76 = vrot.lane.b32.xlu0 %v55, 17
  %v77 = vpop.permute.xlu0 %76
  %vm78 = vcmask 138240
  %v79 = vsel %vm78, %v75, %v77
  %v83 = vsel %vm78, 0.0, %v75
  %v84 = vsel %vm78, %v77, 0.0
  %v86 = vlaneseq
  %v87 = vshrl.u32 %v86, 7
  %v88 = vsub.s32 0, %v87
  %v89 = vrot.slane %v53, %v88
  %v90 = vlaneseq
  %v91 = vshrl.u32 %v90, 7
  %v92 = vsub.s32 2, %v91
  %v93 = vrot.slane %v53, %v92
  %v96 = vlaneseq
  %v97 = vshrl.u32 %v96, 7
  %v98 = vsub.s32 0, %v97
  %v99 = vrot.slane %v89, %v98
  %v100 = vlaneseq
  %v101 = vshrl.u32 %v100, 7
  %v102 = vsub.s32 0, %v101
  %v103 = vrot.slane %v93, %v102
  %v104 = vmul.f32 %v83, %v99
  %v105 = vmul.f32 %v79, %v103
  %106 = vst [vmem:[#allocation2] sm:$0xff] %v104
  %107 = vst [vmem:[#allocation2 + $0x8] sm:$0xff] %v105
  %110 = vrot.lane.b32.xlu0 %v83, 127
  %v111 = vpop.permute.xlu0 %110
  %112 = vrot.lane.b32.xlu0 %v79, 127
  %v113 = vpop.permute.xlu0 %112
  %114 = vrot.lane.b32.xlu0 %v84, 127
  %v115 = vpop.permute.xlu0 %114
  %vm116 = vcmask 1039360
  %v117 = vsel %vm116, %v111, %v113
  %v118 = vsel %vm116, %v113, %v115
  %121 = vst [vmem:[#allocation2 + $0x20] sm:$0xff] %v117
  %122 = vst [vmem:[#allocation2 + $0x28] sm:$0xff] %v118
  %v123 = vlaneseq
  %v124 = vshrl.u32 %v123, 7
  %v125 = vsub.s32 1, %v124
  %v126 = vrot.slane %v53, %v125
  %v127 = vlaneseq
  %v128 = vshrl.u32 %v127, 7
  %v129 = vsub.s32 3, %v128
  %v130 = vrot.slane %v53, %v129
  %v133 = vlaneseq
  %v134 = vshrl.u32 %v133, 7
  %v135 = vsub.s32 1, %v134
  %v136 = vrot.slane %v126, %v135
  %v137 = vlaneseq
  %v138 = vshrl.u32 %v137, 7
  %v139 = vsub.s32 1, %v138
  %v140 = vrot.slane %v130, %v139
  %143 = vrot.lane.b32.xlu0 %v136, 2
  %v144 = vpop.permute.xlu0 %143
  %145 = vrot.lane.b32.xlu0 %v140, 2
  %v146 = vpop.permute.xlu0 %145
  %vm147 = vcmask 15360
  %v148 = vsel %vm147, %v144, %v146
  %v152 = vmul.f32 %v83, %v144
  %v153 = vmul.f32 %v79, %v148
  %v154 = vmul.f32 %v84, %v146
  %158 = vrot.lane.b32.xlu0 %v152, 126
  %v159 = vpop.permute.xlu0 %158
  %160 = vrot.lane.b32.xlu0 %v153, 126
  %v161 = vpop.permute.xlu0 %160
  %162 = vrot.lane.b32.xlu0 %v154, 126
  %v163 = vpop.permute.xlu0 %162
  %vm164 = vcmask 1031168
  %v165 = vsel %vm164, %v159, %v161
  %v166 = vsel %vm164, %v161, %v163
  %169 = vst [vmem:[#allocation2 + $0x40] sm:$0xff] %v165
  %170 = vst [vmem:[#allocation2 + $0x48] sm:$0xff] %v166
  %173 = vrot.lane.b32.xlu0 %v99, 16
  %v174 = vpop.permute.xlu0 %173
  %175 = vrot.lane.b32.xlu0 %v103, 16
  %v176 = vpop.permute.xlu0 %175
  %vm177 = vcmask 130048
  %v178 = vsel %vm177, %v174, %v176
  %v182 = vmul.f32 %v83, %v174
  %v183 = vmul.f32 %v79, %v178
  %v184 = vmul.f32 %v84, %v176
  %188 = vrot.lane.b32.xlu0 %v182, 112
  %v189 = vpop.permute.xlu0 %188
  %190 = vrot.lane.b32.xlu0 %v183, 112
  %v191 = vpop.permute.xlu0 %190
  %192 = vrot.lane.b32.xlu0 %v184, 112
  %v193 = vpop.permute.xlu0 %192
  %vm194 = vcmask 916480
  %v195 = vsel %vm194, %v189, %v191
  %v196 = vsel %vm194, %v191, %v193
  %199 = vst [vmem:[#allocation2 + $0x60] sm:$0xff] %v195
  %200 = vst [vmem:[#allocation2 + $0x68] sm:$0xff] %v196
  %201 = vrot.lane.b32.xlu0 %v83, 111
  %v202 = vpop.permute.xlu0 %201
  %203 = vrot.lane.b32.xlu0 %v79, 111
  %v204 = vpop.permute.xlu0 %203
  %205 = vrot.lane.b32.xlu0 %v84, 111
  %v206 = vpop.permute.xlu0 %205
  %vm207 = vcmask 908288
  %v208 = vsel %vm207, %v202, %v204
  %v209 = vsel %vm207, %v204, %v206
  %212 = vst [vmem:[#allocation2 + $0x80] sm:$0xff] %v208
  %213 = vst [vmem:[#allocation2 + $0x88] sm:$0xff] %v209
  %214 = vrot.lane.b32.xlu0 %v136, 18
  %v215 = vpop.permute.xlu0 %214
  %216 = vrot.lane.b32.xlu0 %v140, 18
  %v217 = vpop.permute.xlu0 %216
  %vm218 = vcmask 146432
  %v219 = vsel %vm218, %v215, %v217
  %v223 = vmul.f32 %v83, %v215
  %v224 = vmul.f32 %v79, %v219
  %v225 = vmul.f32 %v84, %v217
  %229 = vrot.lane.b32.xlu0 %v223, 110
  %v230 = vpop.permute.xlu0 %229
  %231 = vrot.lane.b32.xlu0 %v224, 110
  %v232 = vpop.permute.xlu0 %231
  %233 = vrot.lane.b32.xlu0 %v225, 110
  %v234 = vpop.permute.xlu0 %233
  %vm235 = vcmask 900096
  %v236 = vsel %vm235, %v230, %v232
  %v237 = vsel %vm235, %v232, %v234
  %240 = vst [vmem:[#allocation2 + $0xa0] sm:$0xff] %v236
  %241 = vst [vmem:[#allocation2 + $0xa8] sm:$0xff] %v237
  %242 = vrot.lane.b32.xlu0 %v99, 32
  %v243 = vpop.permute.xlu0 %242
  %244 = vrot.lane.b32.xlu0 %v103, 32
  %v245 = vpop.permute.xlu0 %244
  %vm246 = vcmask 261120
  %v247 = vsel %vm246, %v243, %v245
  %v251 = vmul.f32 %v83, %v243
  %v252 = vmul.f32 %v79, %v247
  %v253 = vmul.f32 %v84, %v245
  %257 = vrot.lane.b32.xlu0 %v251, 96
  %v258 = vpop.permute.xlu0 %257
  %259 = vrot.lane.b32.xlu0 %v252, 96
  %v260 = vpop.permute.xlu0 %259
  %261 = vrot.lane.b32.xlu0 %v253, 96
  %v262 = vpop.permute.xlu0 %261
  %vm263 = vcmask 785408
  %v264 = vsel %vm263, %v258, %v260
  %v265 = vsel %vm263, %v260, %v262
  %268 = vst [vmem:[#allocation2 + $0xc0] sm:$0xff] %v264
  %269 = vst [vmem:[#allocation2 + $0xc8] sm:$0xff] %v265
  %270 = vrot.lane.b32.xlu0 %v83, 95
  %v271 = vpop.permute.xlu0 %270
  %272 = vrot.lane.b32.xlu0 %v79, 95
  %v273 = vpop.permute.xlu0 %272
  %274 = vrot.lane.b32.xlu0 %v84, 95
  %v275 = vpop.permute.xlu0 %274
  %vm276 = vcmask 777216
  %v277 = vsel %vm276, %v271, %v273
  %v278 = vsel %vm276, %v273, %v275
  %281 = vst [vmem:[#allocation2 + $0xe0] sm:$0xff] %v277
  %282 = vst [vmem:[#allocation2 + $0xe8] sm:$0xff] %v278
  %283 = vrot.lane.b32.xlu0 %v136, 34
  %v284 = vpop.permute.xlu0 %283
  %285 = vrot.lane.b32.xlu0 %v140, 34
  %v286 = vpop.permute.xlu0 %285
  %vm287 = vcmask 277504
  %v288 = vsel %vm287, %v284, %v286
  %v292 = vmul.f32 %v83, %v284
  %v293 = vmul.f32 %v79, %v288
  %v294 = vmul.f32 %v84, %v286
  %298 = vrot.lane.b32.xlu0 %v292, 94
  %v299 = vpop.permute.xlu0 %298
  %300 = vrot.lane.b32.xlu0 %v293, 94
  %v301 = vpop.permute.xlu0 %300
  %302 = vrot.lane.b32.xlu0 %v294, 94
  %v303 = vpop.permute.xlu0 %302
  %vm304 = vcmask 769024
  %v305 = vsel %vm304, %v299, %v301
  %v306 = vsel %vm304, %v301, %v303
  %309 = vst [vmem:[#allocation2 + $0x100] sm:$0xff] %v305
  %310 = vst [vmem:[#allocation2 + $0x108] sm:$0xff] %v306
  %313 = vrot.lane.b32.xlu0 %v57, 17
  %v314 = vpop.permute.xlu0 %313
  %315 = vrot.lane.b32.xlu0 %v58, 17
  %v316 = vpop.permute.xlu0 %315
  %v317 = vsel %vm78, %v314, %v316
  %v321 = vsel %vm78, 0.0, %v314
  %v322 = vsel %vm78, %v316, 0.0
  %v323 = vmul.f32 %v321, %v99
  %v324 = vmul.f32 %v317, %v103
  %325 = vst [vmem:[#allocation2 + $0x10] sm:$0xff] %v323
  %326 = vst [vmem:[#allocation2 + $0x18] sm:$0xff] %v324
  %329 = vrot.lane.b32.xlu0 %v321, 127
  %v330 = vpop.permute.xlu0 %329
  %331 = vrot.lane.b32.xlu0 %v317, 127
  %v332 = vpop.permute.xlu0 %331
  %333 = vrot.lane.b32.xlu0 %v322, 127
  %v334 = vpop.permute.xlu0 %333
  %v335 = vsel %vm116, %v330, %v332
  %v336 = vsel %vm116, %v332, %v334
  %339 = vst [vmem:[#allocation2 + $0x30] sm:$0xff] %v335
  %340 = vst [vmem:[#allocation2 + $0x38] sm:$0xff] %v336
  %v341 = vmul.f32 %v321, %v144
  %v342 = vmul.f32 %v317, %v148
  %v343 = vmul.f32 %v322, %v146
  %347 = vrot.lane.b32.xlu0 %v341, 126
  %v348 = vpop.permute.xlu0 %347
  %349 = vrot.lane.b32.xlu0 %v342, 126
  %v350 = vpop.permute.xlu0 %349
  %351 = vrot.lane.b32.xlu0 %v343, 126
  %v352 = vpop.permute.xlu0 %351
  %v353 = vsel %vm164, %v348, %v350
  %v354 = vsel %vm164, %v350, %v352
  %357 = vst [vmem:[#allocation2 + $0x50] sm:$0xff] %v353
  %358 = vst [vmem:[#allocation2 + $0x58] sm:$0xff] %v354
  %v359 = vmul.f32 %v321, %v174
  %v360 = vmul.f32 %v317, %v178
  %v361 = vmul.f32 %v322, %v176
  %365 = vrot.lane.b32.xlu0 %v359, 112
  %v366 = vpop.permute.xlu0 %365
  %367 = vrot.lane.b32.xlu0 %v360, 112
  %v368 = vpop.permute.xlu0 %367
  %369 = vrot.lane.b32.xlu0 %v361, 112
  %v370 = vpop.permute.xlu0 %369
  %v371 = vsel %vm194, %v366, %v368
  %v372 = vsel %vm194, %v368, %v370
  %375 = vst [vmem:[#allocation2 + $0x70] sm:$0xff] %v371
  %376 = vst [vmem:[#allocation2 + $0x78] sm:$0xff] %v372
  %377 = vrot.lane.b32.xlu0 %v321, 111
  %v378 = vpop.permute.xlu0 %377
  %379 = vrot.lane.b32.xlu0 %v317, 111
  %v380 = vpop.permute.xlu0 %379
  %381 = vrot.lane.b32.xlu0 %v322, 111
  %v382 = vpop.permute.xlu0 %381
  %v383 = vsel %vm207, %v378, %v380
  %v384 = vsel %vm207, %v380, %v382
  %387 = vst [vmem:[#allocation2 + $0x90] sm:$0xff] %v383
  %388 = vst [vmem:[#allocation2 + $0x98] sm:$0xff] %v384
  %v389 = vmul.f32 %v321, %v215
  %v390 = vmul.f32 %v317, %v219
  %v391 = vmul.f32 %v322, %v217
  %395 = vrot.lane.b32.xlu0 %v389, 110
  %v396 = vpop.permute.xlu0 %395
  %397 = vrot.lane.b32.xlu0 %v390, 110
  %v398 = vpop.permute.xlu0 %397
  %399 = vrot.lane.b32.xlu0 %v391, 110
  %v400 = vpop.permute.xlu0 %399
  %v401 = vsel %vm235, %v396, %v398
  %v402 = vsel %vm235, %v398, %v400
  %405 = vst [vmem:[#allocation2 + $0xb0] sm:$0xff] %v401
  %406 = vst [vmem:[#allocation2 + $0xb8] sm:$0xff] %v402
  %v407 = vmul.f32 %v321, %v243
  %v408 = vmul.f32 %v317, %v247
  %v409 = vmul.f32 %v322, %v245
  %413 = vrot.lane.b32.xlu0 %v407, 96
  %v414 = vpop.permute.xlu0 %413
  %415 = vrot.lane.b32.xlu0 %v408, 96
  %v416 = vpop.permute.xlu0 %415
  %417 = vrot.lane.b32.xlu0 %v409, 96
  %v418 = vpop.permute.xlu0 %417
  %v419 = vsel %vm263, %v414, %v416
  %v420 = vsel %vm263, %v416, %v418
  %423 = vst [vmem:[#allocation2 + $0xd0] sm:$0xff] %v419
  %424 = vst [vmem:[#allocation2 + $0xd8] sm:$0xff] %v420
  %425 = vrot.lane.b32.xlu0 %v321, 95
  %v426 = vpop.permute.xlu0 %425
  %427 = vrot.lane.b32.xlu0 %v317, 95
  %v428 = vpop.permute.xlu0 %427
  %429 = vrot.lane.b32.xlu0 %v322, 95
  %v430 = vpop.permute.xlu0 %429
  %v431 = vsel %vm276, %v426, %v428
  %v432 = vsel %vm276, %v428, %v430
  %435 = vst [vmem:[#allocation2 + $0xf0] sm:$0xff] %v431
  %436 = vst [vmem:[#allocation2 + $0xf8] sm:$0xff] %v432
  %v437 = vmul.f32 %v321, %v284
  %v438 = vmul.f32 %v317, %v288
  %v439 = vmul.f32 %v322, %v286
  %443 = vrot.lane.b32.xlu0 %v437, 94
  %v444 = vpop.permute.xlu0 %443
  %445 = vrot.lane.b32.xlu0 %v438, 94
  %v446 = vpop.permute.xlu0 %445
  %447 = vrot.lane.b32.xlu0 %v439, 94
  %v448 = vpop.permute.xlu0 %447
  %v449 = vsel %vm304, %v444, %v446
  %v450 = vsel %vm304, %v446, %v448
  %453 = vst [vmem:[#allocation2 + $0x110] sm:$0xff] %v449
  %454 = vst [vmem:[#allocation2 + $0x118] sm:$0xff] %v450
  %v455 = vld [vmem:[#allocation2] sm:$0xff]
  %v456 = vld [vmem:[#allocation2 + $0x8] sm:$0xff]
  %v457 = vld [vmem:[#allocation2 + $0x10] sm:$0xff]
  %v458 = vld [vmem:[#allocation2 + $0x18] sm:$0xff]
  %v459 = vld [vmem:[#allocation2 + $0x20] sm:$0xff]
  %v460 = vld [vmem:[#allocation2 + $0x28] sm:$0xff]
  %v461 = vld [vmem:[#allocation2 + $0x30] sm:$0xff]
  %v462 = vld [vmem:[#allocation2 + $0x38] sm:$0xff]
  %v463 = vld [vmem:[#allocation2 + $0x40] sm:$0xff]
  %v464 = vld [vmem:[#allocation2 + $0x48] sm:$0xff]
  %v465 = vld [vmem:[#allocation2 + $0x50] sm:$0xff]
  %v466 = vld [vmem:[#allocation2 + $0x58] sm:$0xff]
  %v467 = vld [vmem:[#allocation2 + $0x60] sm:$0xff]
  %v468 = vld [vmem:[#allocation2 + $0x68] sm:$0xff]
  %v469 = vld [vmem:[#allocation2 + $0x70] sm:$0xff]
  %v470 = vld [vmem:[#allocation2 + $0x78] sm:$0xff]
  %v471 = vld [vmem:[#allocation2 + $0x80] sm:$0xff]
  %v472 = vld [vmem:[#allocation2 + $0x88] sm:$0xff]
  %v473 = vld [vmem:[#allocation2 + $0x90] sm:$0xff]
  %v474 = vld [vmem:[#allocation2 + $0x98] sm:$0xff]
  %v475 = vld [vmem:[#allocation2 + $0xa0] sm:$0xff]
  %v476 = vld [vmem:[#allocation2 + $0xa8] sm:$0xff]
  %v477 = vld [vmem:[#allocation2 + $0xb0] sm:$0xff]
  %v478 = vld [vmem:[#allocation2 + $0xb8] sm:$0xff]
  %v479 = vld [vmem:[#allocation2 + $0xc0] sm:$0xff]
  %v480 = vld [vmem:[#allocation2 + $0xc8] sm:$0xff]
  %v481 = vld [vmem:[#allocation2 + $0xd0] sm:$0xff]
  %v482 = vld [vmem:[#allocation2 + $0xd8] sm:$0xff]
  %v483 = vld [vmem:[#allocation2 + $0xe0] sm:$0xff]
  %v484 = vld [vmem:[#allocation2 + $0xe8] sm:$0xff]
  %v485 = vld [vmem:[#allocation2 + $0xf0] sm:$0xff]
  %v486 = vld [vmem:[#allocation2 + $0xf8] sm:$0xff]
  %v487 = vld [vmem:[#allocation2 + $0x100] sm:$0xff]
  %v488 = vld [vmem:[#allocation2 + $0x108] sm:$0xff]
  %v489 = vld [vmem:[#allocation2 + $0x110] sm:$0xff]
  %v490 = vld [vmem:[#allocation2 + $0x118] sm:$0xff]
  %vm491 = vcmask 588800
  %v493 = vsel %vm491, %v59, 0
  %495 = vmatprep.subr.mxu0 0.0
  %496 = vmatpush1.msra.mxu0 0.0
  %497 = vmatprep.subr.mxu0 0.0
  %498 = vmatpush1.msra.mxu0 0.0
  %499 = vmatprep.subr.mxu0 0.0
  %500 = vmatpush1.msra.mxu0 0.0
  %501 = vmatprep.subr.mxu0 0.0
  %502 = vmatpush1.msra.mxu0 0.0
  %503 = vmatprep.subr.mxu0 0.0
  %504 = vmatpush1.msra.mxu0 0.0
  %505 = vmatprep.subr.mxu0 0.0
  %506 = vmatpush1.msra.mxu0 0.0
  %507 = vmatprep.subr.mxu0 0.0
  %508 = vmatpush1.msra.mxu0 0.0
  %509 = vmatprep.subr.mxu0 %v488
  %510 = vmatpush1.msra.mxu0 %v487
  %511 = vmatprep.subr.mxu0 %v484
  %512 = vmatpush1.msra.mxu0 %v483
  %513 = vmatprep.subr.mxu0 %v480
  %514 = vmatpush1.msra.mxu0 %v479
  %515 = vmatprep.subr.mxu0 %v476
  %516 = vmatpush1.msra.mxu0 %v475
  %517 = vmatprep.subr.mxu0 %v472
  %518 = vmatpush1.msra.mxu0 %v471
  %519 = vmatprep.subr.mxu0 %v468
  %520 = vmatpush1.msra.mxu0 %v467
  %521 = vmatprep.subr.mxu0 %v464
  %522 = vmatpush1.msra.mxu0 %v463
  %523 = vmatprep.subr.mxu0 %v460
  %524 = vmatpush1.msra.mxu0 %v459
  %525 = vmatprep.subr.mxu0 %v456
  %526 = vmatpush1.msra.mxu0 %v455
  %527 = vmatprep.subr.mxu0 0.0
  %528 = vmatpush2.msra.mxu0 0.0
  %529 = vmatprep.subr.mxu0 0.0
  %530 = vmatpush2.msra.mxu0 0.0
  %531 = vmatprep.subr.mxu0 0.0
  %532 = vmatpush2.msra.mxu0 0.0
  %533 = vmatprep.subr.mxu0 0.0
  %534 = vmatpush2.msra.mxu0 0.0
  %535 = vmatprep.subr.mxu0 0.0
  %536 = vmatpush2.msra.mxu0 0.0
  %537 = vmatprep.subr.mxu0 0.0
  %538 = vmatpush2.msra.mxu0 0.0
  %539 = vmatprep.subr.mxu0 0.0
  %540 = vmatpush2.msra.mxu0 0.0
  %541 = vmatprep.subr.mxu0 0.0
  %542 = vmatpush2.msra.mxu0 0.0
  %543 = vmatprep.subr.mxu0 0.0
  %544 = vmatpush2.msra.mxu0 0.0
  %545 = vmatprep.subr.mxu0 0.0
  %546 = vmatpush2.msra.mxu0 0.0
  %547 = vmatprep.subr.mxu0 0.0
  %548 = vmatpush2.msra.mxu0 0.0
  %549 = vmatprep.subr.mxu0 0.0
  %550 = vmatpush2.msra.mxu0 0.0
  %551 = vmatprep.subr.mxu0 0.0
  %552 = vmatpush2.msra.mxu0 0.0
  %553 = vmatprep.subr.mxu0 0.0
  %554 = vmatpush2.msra.mxu0 0.0
  %555 = vmatprep.subr.mxu0 0.0
  %556 = vmatpush2.msra.mxu0 0.0
  %557 = vmatprep.subr.mxu0 0.0
  %558 = vmatpush2.msra.mxu0 0.0
  %559 = vmatprep.mubr.f32.mxu0 0.0
  %560 = vmatmul.mubr.f32.gmra.mxu0 %v493
  %v561 = vpop.f32.mrf.mxu0
  %v562 = vadd.f32 0.0, %v561
  %v563 = vpop.f32.mrf.mxu0
  %v564 = vadd.f32 0.0, %v563
  %565 = vdwg.mxu0
  %566 = vmatprep.subr.mxu0 0.0
  %567 = vmatpush1.msra.mxu0 0.0
  %568 = vmatprep.subr.mxu0 0.0
  %569 = vmatpush1.msra.mxu0 0.0
  %570 = vmatprep.subr.mxu0 0.0
  %571 = vmatpush1.msra.mxu0 0.0
  %572 = vmatprep.subr.mxu0 0.0
  %573 = vmatpush1.msra.mxu0 0.0
  %574 = vmatprep.subr.mxu0 0.0
  %575 = vmatpush1.msra.mxu0 0.0
  %576 = vmatprep.subr.mxu0 0.0
  %577 = vmatpush1.msra.mxu0 0.0
  %578 = vmatprep.subr.mxu0 0.0
  %579 = vmatpush1.msra.mxu0 0.0
  %580 = vmatprep.subr.mxu0 %v490
  %581 = vmatpush1.msra.mxu0 %v489
  %582 = vmatprep.subr.mxu0 %v486
  %583 = vmatpush1.msra.mxu0 %v485
  %584 = vmatprep.subr.mxu0 %v482
  %585 = vmatpush1.msra.mxu0 %v481
  %586 = vmatprep.subr.mxu0 %v478
  %587 = vmatpush1.msra.mxu0 %v477
  %588 = vmatprep.subr.mxu0 %v474
  %589 = vmatpush1.msra.mxu0 %v473
  %590 = vmatprep.subr.mxu0 %v470
  %591 = vmatpush1.msra.mxu0 %v469
  %592 = vmatprep.subr.mxu0 %v466
  %593 = vmatpush1.msra.mxu0 %v465
  %594 = vmatprep.subr.mxu0 %v462
  %595 = vmatpush1.msra.mxu0 %v461
  %596 = vmatprep.subr.mxu0 %v458
  %597 = vmatpush1.msra.mxu0 %v457
  %598 = vmatprep.subr.mxu0 0.0
  %599 = vmatpush2.msra.mxu0 0.0
  %600 = vmatprep.subr.mxu0 0.0
  %601 = vmatpush2.msra.mxu0 0.0
  %602 = vmatprep.subr.mxu0 0.0
  %603 = vmatpush2.msra.mxu0 0.0
  %604 = vmatprep.subr.mxu0 0.0
  %605 = vmatpush2.msra.mxu0 0.0
  %606 = vmatprep.subr.mxu0 0.0
  %607 = vmatpush2.msra.mxu0 0.0
  %608 = vmatprep.subr.mxu0 0.0
  %609 = vmatpush2.msra.mxu0 0.0
  %610 = vmatprep.subr.mxu0 0.0
  %611 = vmatpush2.msra.mxu0 0.0
  %612 = vmatprep.subr.mxu0 0.0
  %613 = vmatpush2.msra.mxu0 0.0
  %614 = vmatprep.subr.mxu0 0.0
  %615 = vmatpush2.msra.mxu0 0.0
  %616 = vmatprep.subr.mxu0 0.0
  %617 = vmatpush2.msra.mxu0 0.0
  %618 = vmatprep.subr.mxu0 0.0
  %619 = vmatpush2.msra.mxu0 0.0
  %620 = vmatprep.subr.mxu0 0.0
  %621 = vmatpush2.msra.mxu0 0.0
  %622 = vmatprep.subr.mxu0 0.0
  %623 = vmatpush2.msra.mxu0 0.0
  %624 = vmatprep.subr.mxu0 0.0
  %625 = vmatpush2.msra.mxu0 0.0
  %626 = vmatprep.subr.mxu0 0.0
  %627 = vmatpush2.msra.mxu0 0.0
  %628 = vmatprep.subr.mxu0 0.0
  %629 = vmatpush2.msra.mxu0 0.0
  %630 = vmatprep.mubr.f32.mxu0 0.0
  %631 = vmatmul.mubr.f32.gmra.mxu0 %v493
  %v632 = vpop.f32.mrf.mxu0
  %v633 = vadd.f32 0.0, %v632
  %v634 = vpop.f32.mrf.mxu0
  %v635 = vadd.f32 0.0, %v634
  %636 = vdwg.mxu0
  %v637 = vadd.f32 %v562, %v564
  %638 = vadd.xlane.f32.xlu0 %v637
  %v639 = vpop.xlane.xlu0 %638
  %v640 = vmul.f32 %v562, %v562
  %v641 = vmul.f32 %v564, %v564
  %v642 = vadd.f32 %v640, %v641
  %643 = vadd.xlane.f32.xlu0 %v642
  %v644 = vpop.xlane.xlu0 %643
  %v645 = vadd.f32 %v633, %v635
  %646 = vadd.xlane.f32.xlu0 %v645
  %v647 = vpop.xlane.xlu0 %646
  %v648 = vmul.f32 %v633, %v633
  %v649 = vmul.f32 %v635, %v635
  %v650 = vadd.f32 %v648, %v649
  %651 = vadd.xlane.f32.xlu0 %v650
  %v652 = vpop.xlane.xlu0 %651
  %vm653 = vcmask 7168
  %v654 = vsel %vm653, %v639, %v647
  %v655 = vsel %vm653, %v644, %v652
  %v656 = vsel %vm147, %v654, 0.0
  %657 = vadd.xlane.f32.xlu0 %v656
  %v658 = vpop.xlane.xlu0 %657
  %v659 = vrcp.pop 512.0
  %v660 = vmul.f32 %v658, %v659
  %v661 = vsel %vm147, %v655, 0.0
  %662 = vadd.xlane.f32.xlu0 %v661
  %v663 = vpop.xlane.xlu0 %662
  %v664 = vmul.f32 %v663, %v659
  %v665 = vmul.f32 %v660, %v660
  %v666 = vsub.f32 %v664, %v665
  %v667 = vadd.f32 %v666, 1e-05
  %v668 = vrsqrt.pop %v667
  %v669 = vmul.f32 %v60, %v668
  %v670 = vmul.f32 %v660, %v669
  %v671 = vsub.f32 %v61, %v670
  %v672 = vrcp.pop 256.0
  %v673 = vmul.f32 %v654, %v672
  %675 = vset.pattern.permute.xlu0 0
  %676 = vperm.xlu0 %675, %v669
  %v677 = vpop.permute.xlu0 %676
  %v679 = vmul.f32 %v673, %v677
  %681 = vset.pattern.permute.xlu0 0
  %682 = vperm.xlu0 %681, %v671
  %v683 = vpop.permute.xlu0 %682
  %v685 = vadd.f32 %v679, %v683
  %687 = vset.pattern.permute.xlu0 0
  %688 = vperm.xlu0 %687, %v63
  %v689 = vpop.permute.xlu0 %688
  %vm691 = vcmask 64512
  %v693 = vsel %vm691, %v62, 0
  %695 = vmatprep.subr.mxu0 0.0
  %696 = vmatpush1.msra.mxu0 0.0
  %697 = vmatprep.subr.mxu0 0.0
  %698 = vmatpush1.msra.mxu0 0.0
  %699 = vmatprep.subr.mxu0 0.0
  %700 = vmatpush1.msra.mxu0 0.0
  %701 = vmatprep.subr.mxu0 0.0
  %702 = vmatpush1.msra.mxu0 0.0
  %703 = vmatprep.subr.mxu0 0.0
  %704 = vmatpush1.msra.mxu0 0.0
  %705 = vmatprep.subr.mxu0 0.0
  %706 = vmatpush1.msra.mxu0 0.0
  %707 = vmatprep.subr.mxu0 0.0
  %708 = vmatpush1.msra.mxu0 0.0
  %709 = vmatprep.subr.mxu0 0.0
  %710 = vmatpush1.msra.mxu0 0.0
  %711 = vmatprep.subr.mxu0 0.0
  %712 = vmatpush1.msra.mxu0 0.0
  %713 = vmatprep.subr.mxu0 0.0
  %714 = vmatpush1.msra.mxu0 0.0
  %715 = vmatprep.subr.mxu0 0.0
  %716 = vmatpush1.msra.mxu0 0.0
  %717 = vmatprep.subr.mxu0 0.0
  %718 = vmatpush1.msra.mxu0 0.0
  %719 = vmatprep.subr.mxu0 0.0
  %720 = vmatpush1.msra.mxu0 0.0
  %721 = vmatprep.subr.mxu0 0.0
  %722 = vmatpush1.msra.mxu0 0.0
  %723 = vmatprep.subr.mxu0 0.0
  %724 = vmatpush1.msra.mxu0 0.0
  %725 = vmatprep.subr.mxu0 0.0
  %726 = vmatpush1.msra.mxu0 %v685
  %727 = vmatprep.subr.mxu0 0.0
  %728 = vmatpush2.msra.mxu0 0.0
  %729 = vmatprep.subr.mxu0 0.0
  %730 = vmatpush2.msra.mxu0 0.0
  %731 = vmatprep.subr.mxu0 0.0
  %732 = vmatpush2.msra.mxu0 0.0
  %733 = vmatprep.subr.mxu0 0.0
  %734 = vmatpush2.msra.mxu0 0.0
  %735 = vmatprep.subr.mxu0 0.0
  %736 = vmatpush2.msra.mxu0 0.0
  %737 = vmatprep.subr.mxu0 0.0
  %738 = vmatpush2.msra.mxu0 0.0
  %739 = vmatprep.subr.mxu0 0.0
  %740 = vmatpush2.msra.mxu0 0.0
  %741 = vmatprep.subr.mxu0 0.0
  %742 = vmatpush2.msra.mxu0 0.0
  %743 = vmatprep.subr.mxu0 0.0
  %744 = vmatpush2.msra.mxu0 0.0
  %745 = vmatprep.subr.mxu0 0.0
  %746 = vmatpush2.msra.mxu0 0.0
  %747 = vmatprep.subr.mxu0 0.0
  %748 = vmatpush2.msra.mxu0 0.0
  %749 = vmatprep.subr.mxu0 0.0
  %750 = vmatpush2.msra.mxu0 0.0
  %751 = vmatprep.subr.mxu0 0.0
  %752 = vmatpush2.msra.mxu0 0.0
  %753 = vmatprep.subr.mxu0 0.0
  %754 = vmatpush2.msra.mxu0 0.0
  %755 = vmatprep.subr.mxu0 0.0
  %756 = vmatpush2.msra.mxu0 0.0
  %757 = vmatprep.subr.mxu0 0.0
  %758 = vmatpush2.msra.mxu0 0.0
  %759 = vmatprep.mubr.f32.mxu0 0.0
  %760 = vmatmul.mubr.f32.gmra.mxu0 %v693
  %v761 = vpop.f32.mrf.mxu0
  %v762 = vadd.f32 %v689, %v761
  %v763 = vpop.f32.mrf.mxu0
  %764 = vdwg.mxu0
  %v765 = vmax.f32 %v762, 0.0
  %767 = vset.pattern.permute.xlu0 0
  %768 = vperm.xlu0 %767, %v68
  %v769 = vpop.permute.xlu0 %768
  %772 = vset.pattern.permute.xlu0 0
  %773 = vperm.xlu0 %772, %v69
  %v774 = vpop.permute.xlu0 %773
  %777 = vset.pattern.permute.xlu0 0
  %778 = vperm.xlu0 %777, %v70
  %v779 = vpop.permute.xlu0 %778
  %782 = vset.pattern.permute.xlu0 0
  %783 = vperm.xlu0 %782, %v71
  %v784 = vpop.permute.xlu0 %783
  %v787 = vsel %vm691, %v64, 0
  %v790 = vsel %vm691, %v65, 0
  %v793 = vsel %vm691, %v66, 0
  %v796 = vsel %vm691, %v67, 0
  %798 = vmatprep.subr.mxu0 0.0
  %799 = vmatpush1.msra.mxu0 0.0
  %800 = vmatprep.subr.mxu0 0.0
  %801 = vmatpush1.msra.mxu0 0.0
  %802 = vmatprep.subr.mxu0 0.0
  %803 = vmatpush1.msra.mxu0 0.0
  %804 = vmatprep.subr.mxu0 0.0
  %805 = vmatpush1.msra.mxu0 0.0
  %806 = vmatprep.subr.mxu0 0.0
  %807 = vmatpush1.msra.mxu0 0.0
  %808 = vmatprep.subr.mxu0 0.0
  %809 = vmatpush1.msra.mxu0 0.0
  %810 = vmatprep.subr.mxu0 0.0
  %811 = vmatpush1.msra.mxu0 0.0
  %812 = vmatprep.subr.mxu0 0.0
  %813 = vmatpush1.msra.mxu0 0.0
  %814 = vmatprep.subr.mxu0 0.0
  %815 = vmatpush1.msra.mxu0 0.0
  %816 = vmatprep.subr.mxu0 0.0
  %817 = vmatpush1.msra.mxu0 0.0
  %818 = vmatprep.subr.mxu0 0.0
  %819 = vmatpush1.msra.mxu0 0.0
  %820 = vmatprep.subr.mxu0 0.0
  %821 = vmatpush1.msra.mxu0 0.0
  %822 = vmatprep.subr.mxu0 0.0
  %823 = vmatpush1.msra.mxu0 0.0
  %824 = vmatprep.subr.mxu0 0.0
  %825 = vmatpush1.msra.mxu0 0.0
  %826 = vmatprep.subr.mxu0 0.0
  %827 = vmatpush1.msra.mxu0 0.0
  %828 = vmatprep.subr.mxu0 0.0
  %829 = vmatpush1.msra.mxu0 %v765
  %830 = vmatprep.subr.mxu0 0.0
  %831 = vmatpush2.msra.mxu0 0.0
  %832 = vmatprep.subr.mxu0 0.0
  %833 = vmatpush2.msra.mxu0 0.0
  %834 = vmatprep.subr.mxu0 0.0
  %835 = vmatpush2.msra.mxu0 0.0
  %836 = vmatprep.subr.mxu0 0.0
  %837 = vmatpush2.msra.mxu0 0.0
  %838 = vmatprep.subr.mxu0 0.0
  %839 = vmatpush2.msra.mxu0 0.0
  %840 = vmatprep.subr.mxu0 0.0
  %841 = vmatpush2.msra.mxu0 0.0
  %842 = vmatprep.subr.mxu0 0.0
  %843 = vmatpush2.msra.mxu0 0.0
  %844 = vmatprep.subr.mxu0 0.0
  %845 = vmatpush2.msra.mxu0 0.0
  %846 = vmatprep.subr.mxu0 0.0
  %847 = vmatpush2.msra.mxu0 0.0
  %848 = vmatprep.subr.mxu0 0.0
  %849 = vmatpush2.msra.mxu0 0.0
  %850 = vmatprep.subr.mxu0 0.0
  %851 = vmatpush2.msra.mxu0 0.0
  %852 = vmatprep.subr.mxu0 0.0
  %853 = vmatpush2.msra.mxu0 0.0
  %854 = vmatprep.subr.mxu0 0.0
  %855 = vmatpush2.msra.mxu0 0.0
  %856 = vmatprep.subr.mxu0 0.0
  %857 = vmatpush2.msra.mxu0 0.0
  %858 = vmatprep.subr.mxu0 0.0
  %859 = vmatpush2.msra.mxu0 0.0
  %860 = vmatprep.subr.mxu0 0.0
  %861 = vmatpush2.msra.mxu0 0.0
  %862 = vmatprep.mubr.f32.mxu0 0.0
  %863 = vmatmul.mubr.f32.gmra.mxu0 %v787
  %v864 = vpop.f32.mrf.mxu0
  %v865 = vadd.f32 %v769, %v864
  %v866 = vpop.f32.mrf.mxu0
  %867 = vmatprep.mubr.f32.mxu0 0.0
  %868 = vmatmul.mubr.f32.gmra.mxu0 %v790
  %v869 = vpop.f32.mrf.mxu0
  %v870 = vadd.f32 %v774, %v869
  %v871 = vpop.f32.mrf.mxu0
  %872 = vmatprep.mubr.f32.mxu0 0.0
  %873 = vmatmul.mubr.f32.gmra.mxu0 %v793
  %v874 = vpop.f32.mrf.mxu0
  %v875 = vadd.f32 %v779, %v874
  %v876 = vpop.f32.mrf.mxu0
  %877 = vmatprep.mubr.f32.mxu0 0.0
  %878 = vmatmul.mubr.f32.gmra.mxu0 %v796
  %v879 = vpop.f32.mrf.mxu0
  %v880 = vadd.f32 %v784, %v879
  %v881 = vpop.f32.mrf.mxu0
  %882 = vdwg.mxu0
  %v883 = vmul.f32 %v865, 0.5
  %v884 = vmul.f32 %v870, 0.5
  %v885 = vmul.f32 %v875, 0.5
  %v886 = vmul.f32 %v880, 0.5
  %v887 = vtanh.pop %v883
  %v888 = vtanh.pop %v884
  %v889 = vtanh.pop %v885
  %v890 = vtanh.pop %v886
  %v891 = vadd.f32 %v887, 1.0
  %v892 = vmul.f32 %v889, 0.5
  %v893 = vmul.f32 %v890, 0.5
  %v894 = vmul.f32 %v891, %v677
  %v895 = vmul.f32 %v888, %v677
  %v896 = vmul.f32 %v891, %v683
  %v897 = vadd.f32 %v896, %v892
  %v898 = vmul.f32 %v888, %v683
  %v899 = vadd.f32 %v898, %v893
  %901 = vset.pattern.permute.xlu0 0
  %902 = vperm.xlu0 %901, %v894
  %v903 = vpop.permute.xlu0 %902
  %v905 = vmul.f32 %v903, %v562
  %v906 = vmul.f32 %v903, %v564
  %908 = vset.pattern.permute.xlu0 0
  %909 = vperm.xlu0 %908, %v897
  %v910 = vpop.permute.xlu0 %909
  %v912 = vadd.f32 %v905, %v910
  %v913 = vadd.f32 %v906, %v910
  %915 = vset.pattern.permute.xlu0 0
  %916 = vperm.xlu0 %915, %v895
  %v917 = vpop.permute.xlu0 %916
  %v919 = vmul.f32 %v917, %v562
  %v920 = vmul.f32 %v917, %v564
  %922 = vset.pattern.permute.xlu0 0
  %923 = vperm.xlu0 %922, %v899
  %v924 = vpop.permute.xlu0 %923
  %v926 = vadd.f32 %v919, %v924
  %v927 = vadd.f32 %v920, %v924
  %v928 = vmax.f32 %v912, %v926
  %v929 = vmax.f32 %v913, %v927
  %930 = vset.pattern.permute.xlu0 1
  %931 = vperm.xlu0 %930, %v894
  %v932 = vpop.permute.xlu0 %931
  %v934 = vmul.f32 %v932, %v633
  %v935 = vmul.f32 %v932, %v635
  %936 = vset.pattern.permute.xlu0 1
  %937 = vperm.xlu0 %936, %v897
  %v938 = vpop.permute.xlu0 %937
  %v940 = vadd.f32 %v934, %v938
  %v941 = vadd.f32 %v935, %v938
  %942 = vset.pattern.permute.xlu0 1
  %943 = vperm.xlu0 %942, %v895
  %v944 = vpop.permute.xlu0 %943
  %v946 = vmul.f32 %v944, %v633
  %v947 = vmul.f32 %v944, %v635
  %948 = vset.pattern.permute.xlu0 1
  %949 = vperm.xlu0 %948, %v899
  %v950 = vpop.permute.xlu0 %949
  %v952 = vadd.f32 %v946, %v950
  %v953 = vadd.f32 %v947, %v950
  %v954 = vmax.f32 %v940, %v952
  %v955 = vmax.f32 %v941, %v953
  %v956 = vld [vmem:[%s9] sm:$0xff]
  %v957 = vld [vmem:[%s10] sm:$0xff]
  %v958 = vld [vmem:[%s11] sm:$0xff]
  %v959 = vld [vmem:[%s12] sm:$0xff]
  %v960 = vld [vmem:[%s13] sm:$0xff]
  %v961 = vld [vmem:[%s14] sm:$0xff]
  %v962 = vld [vmem:[%s14 + $0x8] sm:$0xff]
  %v963 = vld [vmem:[%s14 + $0x10] sm:$0xff]
  %v964 = vld [vmem:[%s14 + $0x18] sm:$0xff]
  %v965 = vld [vmem:[%s15] sm:$0xff]
  %v966 = vld [vmem:[%s15 + $0x8] sm:$0xff]
  %v967 = vld [vmem:[%s15 + $0x10] sm:$0xff]
  %v968 = vld [vmem:[%s15 + $0x18] sm:$0xff]
  %971 = vrot.lane.b32.xlu0 %v928, 17
  %v972 = vpop.permute.xlu0 %971
  %973 = vrot.lane.b32.xlu0 %v929, 17
  %v974 = vpop.permute.xlu0 %973
  %v975 = vsel %vm78, %v972, %v974
  %v979 = vsel %vm78, 0.0, %v972
  %v980 = vsel %vm78, %v974, 0.0
  %v981 = vmul.f32 %v979, %v99
  %v982 = vmul.f32 %v975, %v103
  %983 = vst [vmem:[#allocation3] sm:$0xff] %v981
  %984 = vst [vmem:[#allocation3 + $0x8] sm:$0xff] %v982
  %987 = vrot.lane.b32.xlu0 %v979, 127
  %v988 = vpop.permute.xlu0 %987
  %989 = vrot.lane.b32.xlu0 %v975, 127
  %v990 = vpop.permute.xlu0 %989
  %991 = vrot.lane.b32.xlu0 %v980, 127
  %v992 = vpop.permute.xlu0 %991
  %v993 = vsel %vm116, %v988, %v990
  %v994 = vsel %vm116, %v990, %v992
  %997 = vst [vmem:[#allocation3 + $0x20] sm:$0xff] %v993
  %998 = vst [vmem:[#allocation3 + $0x28] sm:$0xff] %v994
  %v999 = vmul.f32 %v979, %v144
  %v1000 = vmul.f32 %v975, %v148
  %v1001 = vmul.f32 %v980, %v146
  %1005 = vrot.lane.b32.xlu0 %v999, 126
  %v1006 = vpop.permute.xlu0 %1005
  %1007 = vrot.lane.b32.xlu0 %v1000, 126
  %v1008 = vpop.permute.xlu0 %1007
  %1009 = vrot.lane.b32.xlu0 %v1001, 126
  %v1010 = vpop.permute.xlu0 %1009
  %v1011 = vsel %vm164, %v1006, %v1008
  %v1012 = vsel %vm164, %v1008, %v1010
  %1015 = vst [vmem:[#allocation3 + $0x40] sm:$0xff] %v1011
  %1016 = vst [vmem:[#allocation3 + $0x48] sm:$0xff] %v1012
  %v1017 = vmul.f32 %v979, %v174
  %v1018 = vmul.f32 %v975, %v178
  %v1019 = vmul.f32 %v980, %v176
  %1023 = vrot.lane.b32.xlu0 %v1017, 112
  %v1024 = vpop.permute.xlu0 %1023
  %1025 = vrot.lane.b32.xlu0 %v1018, 112
  %v1026 = vpop.permute.xlu0 %1025
  %1027 = vrot.lane.b32.xlu0 %v1019, 112
  %v1028 = vpop.permute.xlu0 %1027
  %v1029 = vsel %vm194, %v1024, %v1026
  %v1030 = vsel %vm194, %v1026, %v1028
  %1033 = vst [vmem:[#allocation3 + $0x60] sm:$0xff] %v1029
  %1034 = vst [vmem:[#allocation3 + $0x68] sm:$0xff] %v1030
  %1035 = vrot.lane.b32.xlu0 %v979, 111
  %v1036 = vpop.permute.xlu0 %1035
  %1037 = vrot.lane.b32.xlu0 %v975, 111
  %v1038 = vpop.permute.xlu0 %1037
  %1039 = vrot.lane.b32.xlu0 %v980, 111
  %v1040 = vpop.permute.xlu0 %1039
  %v1041 = vsel %vm207, %v1036, %v1038
  %v1042 = vsel %vm207, %v1038, %v1040
  %1045 = vst [vmem:[#allocation3 + $0x80] sm:$0xff] %v1041
  %1046 = vst [vmem:[#allocation3 + $0x88] sm:$0xff] %v1042
  %v1047 = vmul.f32 %v979, %v215
  %v1048 = vmul.f32 %v975, %v219
  %v1049 = vmul.f32 %v980, %v217
  %1053 = vrot.lane.b32.xlu0 %v1047, 110
  %v1054 = vpop.permute.xlu0 %1053
  %1055 = vrot.lane.b32.xlu0 %v1048, 110
  %v1056 = vpop.permute.xlu0 %1055
  %1057 = vrot.lane.b32.xlu0 %v1049, 110
  %v1058 = vpop.permute.xlu0 %1057
  %v1059 = vsel %vm235, %v1054, %v1056
  %v1060 = vsel %vm235, %v1056, %v1058
  %1063 = vst [vmem:[#allocation3 + $0xa0] sm:$0xff] %v1059
  %1064 = vst [vmem:[#allocation3 + $0xa8] sm:$0xff] %v1060
  %v1065 = vmul.f32 %v979, %v243
  %v1066 = vmul.f32 %v975, %v247
  %v1067 = vmul.f32 %v980, %v245
  %1071 = vrot.lane.b32.xlu0 %v1065, 96
  %v1072 = vpop.permute.xlu0 %1071
  %1073 = vrot.lane.b32.xlu0 %v1066, 96
  %v1074 = vpop.permute.xlu0 %1073
  %1075 = vrot.lane.b32.xlu0 %v1067, 96
  %v1076 = vpop.permute.xlu0 %1075
  %v1077 = vsel %vm263, %v1072, %v1074
  %v1078 = vsel %vm263, %v1074, %v1076
  %1081 = vst [vmem:[#allocation3 + $0xc0] sm:$0xff] %v1077
  %1082 = vst [vmem:[#allocation3 + $0xc8] sm:$0xff] %v1078
  %1083 = vrot.lane.b32.xlu0 %v979, 95
  %v1084 = vpop.permute.xlu0 %1083
  %1085 = vrot.lane.b32.xlu0 %v975, 95
  %v1086 = vpop.permute.xlu0 %1085
  %1087 = vrot.lane.b32.xlu0 %v980, 95
  %v1088 = vpop.permute.xlu0 %1087
  %v1089 = vsel %vm276, %v1084, %v1086
  %v1090 = vsel %vm276, %v1086, %v1088
  %1093 = vst [vmem:[#allocation3 + $0xe0] sm:$0xff] %v1089
  %1094 = vst [vmem:[#allocation3 + $0xe8] sm:$0xff] %v1090
  %v1095 = vmul.f32 %v979, %v284
  %v1096 = vmul.f32 %v975, %v288
  %v1097 = vmul.f32 %v980, %v286
  %1101 = vrot.lane.b32.xlu0 %v1095, 94
  %v1102 = vpop.permute.xlu0 %1101
  %1103 = vrot.lane.b32.xlu0 %v1096, 94
  %v1104 = vpop.permute.xlu0 %1103
  %1105 = vrot.lane.b32.xlu0 %v1097, 94
  %v1106 = vpop.permute.xlu0 %1105
  %v1107 = vsel %vm304, %v1102, %v1104
  %v1108 = vsel %vm304, %v1104, %v1106
  %1111 = vst [vmem:[#allocation3 + $0x100] sm:$0xff] %v1107
  %1112 = vst [vmem:[#allocation3 + $0x108] sm:$0xff] %v1108
  %1115 = vrot.lane.b32.xlu0 %v954, 17
  %v1116 = vpop.permute.xlu0 %1115
  %1117 = vrot.lane.b32.xlu0 %v955, 17
  %v1118 = vpop.permute.xlu0 %1117
  %v1119 = vsel %vm78, %v1116, %v1118
  %v1123 = vsel %vm78, 0.0, %v1116
  %v1124 = vsel %vm78, %v1118, 0.0
  %v1125 = vmul.f32 %v1123, %v99
  %v1126 = vmul.f32 %v1119, %v103
  %1127 = vst [vmem:[#allocation3 + $0x10] sm:$0xff] %v1125
  %1128 = vst [vmem:[#allocation3 + $0x18] sm:$0xff] %v1126
  %1131 = vrot.lane.b32.xlu0 %v1123, 127
  %v1132 = vpop.permute.xlu0 %1131
  %1133 = vrot.lane.b32.xlu0 %v1119, 127
  %v1134 = vpop.permute.xlu0 %1133
  %1135 = vrot.lane.b32.xlu0 %v1124, 127
  %v1136 = vpop.permute.xlu0 %1135
  %v1137 = vsel %vm116, %v1132, %v1134
  %v1138 = vsel %vm116, %v1134, %v1136
  %1141 = vst [vmem:[#allocation3 + $0x30] sm:$0xff] %v1137
  %1142 = vst [vmem:[#allocation3 + $0x38] sm:$0xff] %v1138
  %v1143 = vmul.f32 %v1123, %v144
  %v1144 = vmul.f32 %v1119, %v148
  %v1145 = vmul.f32 %v1124, %v146
  %1149 = vrot.lane.b32.xlu0 %v1143, 126
  %v1150 = vpop.permute.xlu0 %1149
  %1151 = vrot.lane.b32.xlu0 %v1144, 126
  %v1152 = vpop.permute.xlu0 %1151
  %1153 = vrot.lane.b32.xlu0 %v1145, 126
  %v1154 = vpop.permute.xlu0 %1153
  %v1155 = vsel %vm164, %v1150, %v1152
  %v1156 = vsel %vm164, %v1152, %v1154
  %1159 = vst [vmem:[#allocation3 + $0x50] sm:$0xff] %v1155
  %1160 = vst [vmem:[#allocation3 + $0x58] sm:$0xff] %v1156
  %v1161 = vmul.f32 %v1123, %v174
  %v1162 = vmul.f32 %v1119, %v178
  %v1163 = vmul.f32 %v1124, %v176
  %1167 = vrot.lane.b32.xlu0 %v1161, 112
  %v1168 = vpop.permute.xlu0 %1167
  %1169 = vrot.lane.b32.xlu0 %v1162, 112
  %v1170 = vpop.permute.xlu0 %1169
  %1171 = vrot.lane.b32.xlu0 %v1163, 112
  %v1172 = vpop.permute.xlu0 %1171
  %v1173 = vsel %vm194, %v1168, %v1170
  %v1174 = vsel %vm194, %v1170, %v1172
  %1177 = vst [vmem:[#allocation3 + $0x70] sm:$0xff] %v1173
  %1178 = vst [vmem:[#allocation3 + $0x78] sm:$0xff] %v1174
  %1179 = vrot.lane.b32.xlu0 %v1123, 111
  %v1180 = vpop.permute.xlu0 %1179
  %1181 = vrot.lane.b32.xlu0 %v1119, 111
  %v1182 = vpop.permute.xlu0 %1181
  %1183 = vrot.lane.b32.xlu0 %v1124, 111
  %v1184 = vpop.permute.xlu0 %1183
  %v1185 = vsel %vm207, %v1180, %v1182
  %v1186 = vsel %vm207, %v1182, %v1184
  %1189 = vst [vmem:[#allocation3 + $0x90] sm:$0xff] %v1185
  %1190 = vst [vmem:[#allocation3 + $0x98] sm:$0xff] %v1186
  %v1191 = vmul.f32 %v1123, %v215
  %v1192 = vmul.f32 %v1119, %v219
  %v1193 = vmul.f32 %v1124, %v217
  %1197 = vrot.lane.b32.xlu0 %v1191, 110
  %v1198 = vpop.permute.xlu0 %1197
  %1199 = vrot.lane.b32.xlu0 %v1192, 110
  %v1200 = vpop.permute.xlu0 %1199
  %1201 = vrot.lane.b32.xlu0 %v1193, 110
  %v1202 = vpop.permute.xlu0 %1201
  %v1203 = vsel %vm235, %v1198, %v1200
  %v1204 = vsel %vm235, %v1200, %v1202
  %1207 = vst [vmem:[#allocation3 + $0xb0] sm:$0xff] %v1203
  %1208 = vst [vmem:[#allocation3 + $0xb8] sm:$0xff] %v1204
  %v1209 = vmul.f32 %v1123, %v243
  %v1210 = vmul.f32 %v1119, %v247
  %v1211 = vmul.f32 %v1124, %v245
  %1215 = vrot.lane.b32.xlu0 %v1209, 96
  %v1216 = vpop.permute.xlu0 %1215
  %1217 = vrot.lane.b32.xlu0 %v1210, 96
  %v1218 = vpop.permute.xlu0 %1217
  %1219 = vrot.lane.b32.xlu0 %v1211, 96
  %v1220 = vpop.permute.xlu0 %1219
  %v1221 = vsel %vm263, %v1216, %v1218
  %v1222 = vsel %vm263, %v1218, %v1220
  %1225 = vst [vmem:[#allocation3 + $0xd0] sm:$0xff] %v1221
  %1226 = vst [vmem:[#allocation3 + $0xd8] sm:$0xff] %v1222
  %1227 = vrot.lane.b32.xlu0 %v1123, 95
  %v1228 = vpop.permute.xlu0 %1227
  %1229 = vrot.lane.b32.xlu0 %v1119, 95
  %v1230 = vpop.permute.xlu0 %1229
  %1231 = vrot.lane.b32.xlu0 %v1124, 95
  %v1232 = vpop.permute.xlu0 %1231
  %v1233 = vsel %vm276, %v1228, %v1230
  %v1234 = vsel %vm276, %v1230, %v1232
  %1237 = vst [vmem:[#allocation3 + $0xf0] sm:$0xff] %v1233
  %1238 = vst [vmem:[#allocation3 + $0xf8] sm:$0xff] %v1234
  %v1239 = vmul.f32 %v1123, %v284
  %v1240 = vmul.f32 %v1119, %v288
  %v1241 = vmul.f32 %v1124, %v286
  %1245 = vrot.lane.b32.xlu0 %v1239, 94
  %v1246 = vpop.permute.xlu0 %1245
  %1247 = vrot.lane.b32.xlu0 %v1240, 94
  %v1248 = vpop.permute.xlu0 %1247
  %1249 = vrot.lane.b32.xlu0 %v1241, 94
  %v1250 = vpop.permute.xlu0 %1249
  %v1251 = vsel %vm304, %v1246, %v1248
  %v1252 = vsel %vm304, %v1248, %v1250
  %1255 = vst [vmem:[#allocation3 + $0x110] sm:$0xff] %v1251
  %1256 = vst [vmem:[#allocation3 + $0x118] sm:$0xff] %v1252
  %v1257 = vld [vmem:[#allocation3] sm:$0xff]
  %v1258 = vld [vmem:[#allocation3 + $0x8] sm:$0xff]
  %v1259 = vld [vmem:[#allocation3 + $0x10] sm:$0xff]
  %v1260 = vld [vmem:[#allocation3 + $0x18] sm:$0xff]
  %v1261 = vld [vmem:[#allocation3 + $0x20] sm:$0xff]
  %v1262 = vld [vmem:[#allocation3 + $0x28] sm:$0xff]
  %v1263 = vld [vmem:[#allocation3 + $0x30] sm:$0xff]
  %v1264 = vld [vmem:[#allocation3 + $0x38] sm:$0xff]
  %v1265 = vld [vmem:[#allocation3 + $0x40] sm:$0xff]
  %v1266 = vld [vmem:[#allocation3 + $0x48] sm:$0xff]
  %v1267 = vld [vmem:[#allocation3 + $0x50] sm:$0xff]
  %v1268 = vld [vmem:[#allocation3 + $0x58] sm:$0xff]
  %v1269 = vld [vmem:[#allocation3 + $0x60] sm:$0xff]
  %v1270 = vld [vmem:[#allocation3 + $0x68] sm:$0xff]
  %v1271 = vld [vmem:[#allocation3 + $0x70] sm:$0xff]
  %v1272 = vld [vmem:[#allocation3 + $0x78] sm:$0xff]
  %v1273 = vld [vmem:[#allocation3 + $0x80] sm:$0xff]
  %v1274 = vld [vmem:[#allocation3 + $0x88] sm:$0xff]
  %v1275 = vld [vmem:[#allocation3 + $0x90] sm:$0xff]
  %v1276 = vld [vmem:[#allocation3 + $0x98] sm:$0xff]
  %v1277 = vld [vmem:[#allocation3 + $0xa0] sm:$0xff]
  %v1278 = vld [vmem:[#allocation3 + $0xa8] sm:$0xff]
  %v1279 = vld [vmem:[#allocation3 + $0xb0] sm:$0xff]
  %v1280 = vld [vmem:[#allocation3 + $0xb8] sm:$0xff]
  %v1281 = vld [vmem:[#allocation3 + $0xc0] sm:$0xff]
  %v1282 = vld [vmem:[#allocation3 + $0xc8] sm:$0xff]
  %v1283 = vld [vmem:[#allocation3 + $0xd0] sm:$0xff]
  %v1284 = vld [vmem:[#allocation3 + $0xd8] sm:$0xff]
  %v1285 = vld [vmem:[#allocation3 + $0xe0] sm:$0xff]
  %v1286 = vld [vmem:[#allocation3 + $0xe8] sm:$0xff]
  %v1287 = vld [vmem:[#allocation3 + $0xf0] sm:$0xff]
  %v1288 = vld [vmem:[#allocation3 + $0xf8] sm:$0xff]
  %v1289 = vld [vmem:[#allocation3 + $0x100] sm:$0xff]
  %v1290 = vld [vmem:[#allocation3 + $0x108] sm:$0xff]
  %v1291 = vld [vmem:[#allocation3 + $0x110] sm:$0xff]
  %v1292 = vld [vmem:[#allocation3 + $0x118] sm:$0xff]
  %v1294 = vsel %vm491, %v956, 0
  %1296 = vmatprep.subr.mxu0 0.0
  %1297 = vmatpush1.msra.mxu0 0.0
  %1298 = vmatprep.subr.mxu0 0.0
  %1299 = vmatpush1.msra.mxu0 0.0
  %1300 = vmatprep.subr.mxu0 0.0
  %1301 = vmatpush1.msra.mxu0 0.0
  %1302 = vmatprep.subr.mxu0 0.0
  %1303 = vmatpush1.msra.mxu0 0.0
  %1304 = vmatprep.subr.mxu0 0.0
  %1305 = vmatpush1.msra.mxu0 0.0
  %1306 = vmatprep.subr.mxu0 0.0
  %1307 = vmatpush1.msra.mxu0 0.0
  %1308 = vmatprep.subr.mxu0 0.0
  %1309 = vmatpush1.msra.mxu0 0.0
  %1310 = vmatprep.subr.mxu0 %v1290
  %1311 = vmatpush1.msra.mxu0 %v1289
  %1312 = vmatprep.subr.mxu0 %v1286
  %1313 = vmatpush1.msra.mxu0 %v1285
  %1314 = vmatprep.subr.mxu0 %v1282
  %1315 = vmatpush1.msra.mxu0 %v1281
  %1316 = vmatprep.subr.mxu0 %v1278
  %1317 = vmatpush1.msra.mxu0 %v1277
  %1318 = vmatprep.subr.mxu0 %v1274
  %1319 = vmatpush1.msra.mxu0 %v1273
  %1320 = vmatprep.subr.mxu0 %v1270
  %1321 = vmatpush1.msra.mxu0 %v1269
  %1322 = vmatprep.subr.mxu0 %v1266
  %1323 = vmatpush1.msra.mxu0 %v1265
  %1324 = vmatprep.subr.mxu0 %v1262
  %1325 = vmatpush1.msra.mxu0 %v1261
  %1326 = vmatprep.subr.mxu0 %v1258
  %1327 = vmatpush1.msra.mxu0 %v1257
  %1328 = vmatprep.subr.mxu0 0.0
  %1329 = vmatpush2.msra.mxu0 0.0
  %1330 = vmatprep.subr.mxu0 0.0
  %1331 = vmatpush2.msra.mxu0 0.0
  %1332 = vmatprep.subr.mxu0 0.0
  %1333 = vmatpush2.msra.mxu0 0.0
  %1334 = vmatprep.subr.mxu0 0.0
  %1335 = vmatpush2.msra.mxu0 0.0
  %1336 = vmatprep.subr.mxu0 0.0
  %1337 = vmatpush2.msra.mxu0 0.0
  %1338 = vmatprep.subr.mxu0 0.0
  %1339 = vmatpush2.msra.mxu0 0.0
  %1340 = vmatprep.subr.mxu0 0.0
  %1341 = vmatpush2.msra.mxu0 0.0
  %1342 = vmatprep.subr.mxu0 0.0
  %1343 = vmatpush2.msra.mxu0 0.0
  %1344 = vmatprep.subr.mxu0 0.0
  %1345 = vmatpush2.msra.mxu0 0.0
  %1346 = vmatprep.subr.mxu0 0.0
  %1347 = vmatpush2.msra.mxu0 0.0
  %1348 = vmatprep.subr.mxu0 0.0
  %1349 = vmatpush2.msra.mxu0 0.0
  %1350 = vmatprep.subr.mxu0 0.0
  %1351 = vmatpush2.msra.mxu0 0.0
  %1352 = vmatprep.subr.mxu0 0.0
  %1353 = vmatpush2.msra.mxu0 0.0
  %1354 = vmatprep.subr.mxu0 0.0
  %1355 = vmatpush2.msra.mxu0 0.0
  %1356 = vmatprep.subr.mxu0 0.0
  %1357 = vmatpush2.msra.mxu0 0.0
  %1358 = vmatprep.subr.mxu0 0.0
  %1359 = vmatpush2.msra.mxu0 0.0
  %1360 = vmatprep.mubr.f32.mxu0 0.0
  %1361 = vmatmul.mubr.f32.gmra.mxu0 %v1294
  %v1362 = vpop.f32.mrf.mxu0
  %v1363 = vadd.f32 0.0, %v1362
  %v1364 = vpop.f32.mrf.mxu0
  %v1365 = vadd.f32 0.0, %v1364
  %1366 = vdwg.mxu0
  %1367 = vmatprep.subr.mxu0 0.0
  %1368 = vmatpush1.msra.mxu0 0.0
  %1369 = vmatprep.subr.mxu0 0.0
  %1370 = vmatpush1.msra.mxu0 0.0
  %1371 = vmatprep.subr.mxu0 0.0
  %1372 = vmatpush1.msra.mxu0 0.0
  %1373 = vmatprep.subr.mxu0 0.0
  %1374 = vmatpush1.msra.mxu0 0.0
  %1375 = vmatprep.subr.mxu0 0.0
  %1376 = vmatpush1.msra.mxu0 0.0
  %1377 = vmatprep.subr.mxu0 0.0
  %1378 = vmatpush1.msra.mxu0 0.0
  %1379 = vmatprep.subr.mxu0 0.0
  %1380 = vmatpush1.msra.mxu0 0.0
  %1381 = vmatprep.subr.mxu0 %v1292
  %1382 = vmatpush1.msra.mxu0 %v1291
  %1383 = vmatprep.subr.mxu0 %v1288
  %1384 = vmatpush1.msra.mxu0 %v1287
  %1385 = vmatprep.subr.mxu0 %v1284
  %1386 = vmatpush1.msra.mxu0 %v1283
  %1387 = vmatprep.subr.mxu0 %v1280
  %1388 = vmatpush1.msra.mxu0 %v1279
  %1389 = vmatprep.subr.mxu0 %v1276
  %1390 = vmatpush1.msra.mxu0 %v1275
  %1391 = vmatprep.subr.mxu0 %v1272
  %1392 = vmatpush1.msra.mxu0 %v1271
  %1393 = vmatprep.subr.mxu0 %v1268
  %1394 = vmatpush1.msra.mxu0 %v1267
  %1395 = vmatprep.subr.mxu0 %v1264
  %1396 = vmatpush1.msra.mxu0 %v1263
  %1397 = vmatprep.subr.mxu0 %v1260
  %1398 = vmatpush1.msra.mxu0 %v1259
  %1399 = vmatprep.subr.mxu0 0.0
  %1400 = vmatpush2.msra.mxu0 0.0
  %1401 = vmatprep.subr.mxu0 0.0
  %1402 = vmatpush2.msra.mxu0 0.0
  %1403 = vmatprep.subr.mxu0 0.0
  %1404 = vmatpush2.msra.mxu0 0.0
  %1405 = vmatprep.subr.mxu0 0.0
  %1406 = vmatpush2.msra.mxu0 0.0
  %1407 = vmatprep.subr.mxu0 0.0
  %1408 = vmatpush2.msra.mxu0 0.0
  %1409 = vmatprep.subr.mxu0 0.0
  %1410 = vmatpush2.msra.mxu0 0.0
  %1411 = vmatprep.subr.mxu0 0.0
  %1412 = vmatpush2.msra.mxu0 0.0
  %1413 = vmatprep.subr.mxu0 0.0
  %1414 = vmatpush2.msra.mxu0 0.0
  %1415 = vmatprep.subr.mxu0 0.0
  %1416 = vmatpush2.msra.mxu0 0.0
  %1417 = vmatprep.subr.mxu0 0.0
  %1418 = vmatpush2.msra.mxu0 0.0
  %1419 = vmatprep.subr.mxu0 0.0
  %1420 = vmatpush2.msra.mxu0 0.0
  %1421 = vmatprep.subr.mxu0 0.0
  %1422 = vmatpush2.msra.mxu0 0.0
  %1423 = vmatprep.subr.mxu0 0.0
  %1424 = vmatpush2.msra.mxu0 0.0
  %1425 = vmatprep.subr.mxu0 0.0
  %1426 = vmatpush2.msra.mxu0 0.0
  %1427 = vmatprep.subr.mxu0 0.0
  %1428 = vmatpush2.msra.mxu0 0.0
  %1429 = vmatprep.subr.mxu0 0.0
  %1430 = vmatpush2.msra.mxu0 0.0
  %1431 = vmatprep.mubr.f32.mxu0 0.0
  %1432 = vmatmul.mubr.f32.gmra.mxu0 %v1294
  %v1433 = vpop.f32.mrf.mxu0
  %v1434 = vadd.f32 0.0, %v1433
  %v1435 = vpop.f32.mrf.mxu0
  %v1436 = vadd.f32 0.0, %v1435
  %1437 = vdwg.mxu0
  %v1438 = vadd.f32 %v1363, %v1365
  %1439 = vadd.xlane.f32.xlu0 %v1438
  %v1440 = vpop.xlane.xlu0 %1439
  %v1441 = vmul.f32 %v1363, %v1363
  %v1442 = vmul.f32 %v1365, %v1365
  %v1443 = vadd.f32 %v1441, %v1442
  %1444 = vadd.xlane.f32.xlu0 %v1443
  %v1445 = vpop.xlane.xlu0 %1444
  %v1446 = vadd.f32 %v1434, %v1436
  %1447 = vadd.xlane.f32.xlu0 %v1446
  %v1448 = vpop.xlane.xlu0 %1447
  %v1449 = vmul.f32 %v1434, %v1434
  %v1450 = vmul.f32 %v1436, %v1436
  %v1451 = vadd.f32 %v1449, %v1450
  %1452 = vadd.xlane.f32.xlu0 %v1451
  %v1453 = vpop.xlane.xlu0 %1452
  %v1454 = vsel %vm653, %v1440, %v1448
  %v1455 = vsel %vm653, %v1445, %v1453
  %v1456 = vsel %vm147, %v1454, 0.0
  %1457 = vadd.xlane.f32.xlu0 %v1456
  %v1458 = vpop.xlane.xlu0 %1457
  %v1459 = vmul.f32 %v1458, %v659
  %v1460 = vsel %vm147, %v1455, 0.0
  %1461 = vadd.xlane.f32.xlu0 %v1460
  %v1462 = vpop.xlane.xlu0 %1461
  %v1463 = vmul.f32 %v1462, %v659
  %v1464 = vmul.f32 %v1459, %v1459
  %v1465 = vsub.f32 %v1463, %v1464
  %v1466 = vadd.f32 %v1465, 1e-05
  %v1467 = vrsqrt.pop %v1466
  %v1468 = vmul.f32 %v957, %v1467
  %v1469 = vmul.f32 %v1459, %v1468
  %v1470 = vsub.f32 %v958, %v1469
  %v1471 = vmul.f32 %v1454, %v672
  %1473 = vset.pattern.permute.xlu0 0
  %1474 = vperm.xlu0 %1473, %v1468
  %v1475 = vpop.permute.xlu0 %1474
  %v1477 = vmul.f32 %v1471, %v1475
  %1479 = vset.pattern.permute.xlu0 0
  %1480 = vperm.xlu0 %1479, %v1470
  %v1481 = vpop.permute.xlu0 %1480
  %v1483 = vadd.f32 %v1477, %v1481
  %1485 = vset.pattern.permute.xlu0 0
  %1486 = vperm.xlu0 %1485, %v960
  %v1487 = vpop.permute.xlu0 %1486
  %v1490 = vsel %vm691, %v959, 0
  %1492 = vmatprep.subr.mxu0 0.0
  %1493 = vmatpush1.msra.mxu0 0.0
  %1494 = vmatprep.subr.mxu0 0.0
  %1495 = vmatpush1.msra.mxu0 0.0
  %1496 = vmatprep.subr.mxu0 0.0
  %1497 = vmatpush1.msra.mxu0 0.0
  %1498 = vmatprep.subr.mxu0 0.0
  %1499 = vmatpush1.msra.mxu0 0.0
  %1500 = vmatprep.subr.mxu0 0.0
  %1501 = vmatpush1.msra.mxu0 0.0
  %1502 = vmatprep.subr.mxu0 0.0
  %1503 = vmatpush1.msra.mxu0 0.0
  %1504 = vmatprep.subr.mxu0 0.0
  %1505 = vmatpush1.msra.mxu0 0.0
  %1506 = vmatprep.subr.mxu0 0.0
  %1507 = vmatpush1.msra.mxu0 0.0
  %1508 = vmatprep.subr.mxu0 0.0
  %1509 = vmatpush1.msra.mxu0 0.0
  %1510 = vmatprep.subr.mxu0 0.0
  %1511 = vmatpush1.msra.mxu0 0.0
  %1512 = vmatprep.subr.mxu0 0.0
  %1513 = vmatpush1.msra.mxu0 0.0
  %1514 = vmatprep.subr.mxu0 0.0
  %1515 = vmatpush1.msra.mxu0 0.0
  %1516 = vmatprep.subr.mxu0 0.0
  %1517 = vmatpush1.msra.mxu0 0.0
  %1518 = vmatprep.subr.mxu0 0.0
  %1519 = vmatpush1.msra.mxu0 0.0
  %1520 = vmatprep.subr.mxu0 0.0
  %1521 = vmatpush1.msra.mxu0 0.0
  %1522 = vmatprep.subr.mxu0 0.0
  %1523 = vmatpush1.msra.mxu0 %v1483
  %1524 = vmatprep.subr.mxu0 0.0
  %1525 = vmatpush2.msra.mxu0 0.0
  %1526 = vmatprep.subr.mxu0 0.0
  %1527 = vmatpush2.msra.mxu0 0.0
  %1528 = vmatprep.subr.mxu0 0.0
  %1529 = vmatpush2.msra.mxu0 0.0
  %1530 = vmatprep.subr.mxu0 0.0
  %1531 = vmatpush2.msra.mxu0 0.0
  %1532 = vmatprep.subr.mxu0 0.0
  %1533 = vmatpush2.msra.mxu0 0.0
  %1534 = vmatprep.subr.mxu0 0.0
  %1535 = vmatpush2.msra.mxu0 0.0
  %1536 = vmatprep.subr.mxu0 0.0
  %1537 = vmatpush2.msra.mxu0 0.0
  %1538 = vmatprep.subr.mxu0 0.0
  %1539 = vmatpush2.msra.mxu0 0.0
  %1540 = vmatprep.subr.mxu0 0.0
  %1541 = vmatpush2.msra.mxu0 0.0
  %1542 = vmatprep.subr.mxu0 0.0
  %1543 = vmatpush2.msra.mxu0 0.0
  %1544 = vmatprep.subr.mxu0 0.0
  %1545 = vmatpush2.msra.mxu0 0.0
  %1546 = vmatprep.subr.mxu0 0.0
  %1547 = vmatpush2.msra.mxu0 0.0
  %1548 = vmatprep.subr.mxu0 0.0
  %1549 = vmatpush2.msra.mxu0 0.0
  %1550 = vmatprep.subr.mxu0 0.0
  %1551 = vmatpush2.msra.mxu0 0.0
  %1552 = vmatprep.subr.mxu0 0.0
  %1553 = vmatpush2.msra.mxu0 0.0
  %1554 = vmatprep.subr.mxu0 0.0
  %1555 = vmatpush2.msra.mxu0 0.0
  %1556 = vmatprep.mubr.f32.mxu0 0.0
  %1557 = vmatmul.mubr.f32.gmra.mxu0 %v1490
  %v1558 = vpop.f32.mrf.mxu0
  %v1559 = vadd.f32 %v1487, %v1558
  %v1560 = vpop.f32.mrf.mxu0
  %1561 = vdwg.mxu0
  %v1562 = vmax.f32 %v1559, 0.0
  %1564 = vset.pattern.permute.xlu0 0
  %1565 = vperm.xlu0 %1564, %v965
  %v1566 = vpop.permute.xlu0 %1565
  %1569 = vset.pattern.permute.xlu0 0
  %1570 = vperm.xlu0 %1569, %v966
  %v1571 = vpop.permute.xlu0 %1570
  %1574 = vset.pattern.permute.xlu0 0
  %1575 = vperm.xlu0 %1574, %v967
  %v1576 = vpop.permute.xlu0 %1575
  %1579 = vset.pattern.permute.xlu0 0
  %1580 = vperm.xlu0 %1579, %v968
  %v1581 = vpop.permute.xlu0 %1580
  %v1584 = vsel %vm691, %v961, 0
  %v1587 = vsel %vm691, %v962, 0
  %v1590 = vsel %vm691, %v963, 0
  %v1593 = vsel %vm691, %v964, 0
  %1595 = vmatprep.subr.mxu0 0.0
  %1596 = vmatpush1.msra.mxu0 0.0
  %1597 = vmatprep.subr.mxu0 0.0
  %1598 = vmatpush1.msra.mxu0 0.0
  %1599 = vmatprep.subr.mxu0 0.0
  %1600 = vmatpush1.msra.mxu0 0.0
  %1601 = vmatprep.subr.mxu0 0.0
  %1602 = vmatpush1.msra.mxu0 0.0
  %1603 = vmatprep.subr.mxu0 0.0
  %1604 = vmatpush1.msra.mxu0 0.0
  %1605 = vmatprep.subr.mxu0 0.0
  %1606 = vmatpush1.msra.mxu0 0.0
  %1607 = vmatprep.subr.mxu0 0.0
  %1608 = vmatpush1.msra.mxu0 0.0
  %1609 = vmatprep.subr.mxu0 0.0
  %1610 = vmatpush1.msra.mxu0 0.0
  %1611 = vmatprep.subr.mxu0 0.0
  %1612 = vmatpush1.msra.mxu0 0.0
  %1613 = vmatprep.subr.mxu0 0.0
  %1614 = vmatpush1.msra.mxu0 0.0
  %1615 = vmatprep.subr.mxu0 0.0
  %1616 = vmatpush1.msra.mxu0 0.0
  %1617 = vmatprep.subr.mxu0 0.0
  %1618 = vmatpush1.msra.mxu0 0.0
  %1619 = vmatprep.subr.mxu0 0.0
  %1620 = vmatpush1.msra.mxu0 0.0
  %1621 = vmatprep.subr.mxu0 0.0
  %1622 = vmatpush1.msra.mxu0 0.0
  %1623 = vmatprep.subr.mxu0 0.0
  %1624 = vmatpush1.msra.mxu0 0.0
  %1625 = vmatprep.subr.mxu0 0.0
  %1626 = vmatpush1.msra.mxu0 %v1562
  %1627 = vmatprep.subr.mxu0 0.0
  %1628 = vmatpush2.msra.mxu0 0.0
  %1629 = vmatprep.subr.mxu0 0.0
  %1630 = vmatpush2.msra.mxu0 0.0
  %1631 = vmatprep.subr.mxu0 0.0
  %1632 = vmatpush2.msra.mxu0 0.0
  %1633 = vmatprep.subr.mxu0 0.0
  %1634 = vmatpush2.msra.mxu0 0.0
  %1635 = vmatprep.subr.mxu0 0.0
  %1636 = vmatpush2.msra.mxu0 0.0
  %1637 = vmatprep.subr.mxu0 0.0
  %1638 = vmatpush2.msra.mxu0 0.0
  %1639 = vmatprep.subr.mxu0 0.0
  %1640 = vmatpush2.msra.mxu0 0.0
  %1641 = vmatprep.subr.mxu0 0.0
  %1642 = vmatpush2.msra.mxu0 0.0
  %1643 = vmatprep.subr.mxu0 0.0
  %1644 = vmatpush2.msra.mxu0 0.0
  %1645 = vmatprep.subr.mxu0 0.0
  %1646 = vmatpush2.msra.mxu0 0.0
  %1647 = vmatprep.subr.mxu0 0.0
  %1648 = vmatpush2.msra.mxu0 0.0
  %1649 = vmatprep.subr.mxu0 0.0
  %1650 = vmatpush2.msra.mxu0 0.0
  %1651 = vmatprep.subr.mxu0 0.0
  %1652 = vmatpush2.msra.mxu0 0.0
  %1653 = vmatprep.subr.mxu0 0.0
  %1654 = vmatpush2.msra.mxu0 0.0
  %1655 = vmatprep.subr.mxu0 0.0
  %1656 = vmatpush2.msra.mxu0 0.0
  %1657 = vmatprep.subr.mxu0 0.0
  %1658 = vmatpush2.msra.mxu0 0.0
  %1659 = vmatprep.mubr.f32.mxu0 0.0
  %1660 = vmatmul.mubr.f32.gmra.mxu0 %v1584
  %v1661 = vpop.f32.mrf.mxu0
  %v1662 = vadd.f32 %v1566, %v1661
  %v1663 = vpop.f32.mrf.mxu0
  %1664 = vmatprep.mubr.f32.mxu0 0.0
  %1665 = vmatmul.mubr.f32.gmra.mxu0 %v1587
  %v1666 = vpop.f32.mrf.mxu0
  %v1667 = vadd.f32 %v1571, %v1666
  %v1668 = vpop.f32.mrf.mxu0
  %1669 = vmatprep.mubr.f32.mxu0 0.0
  %1670 = vmatmul.mubr.f32.gmra.mxu0 %v1590
  %v1671 = vpop.f32.mrf.mxu0
  %v1672 = vadd.f32 %v1576, %v1671
  %v1673 = vpop.f32.mrf.mxu0
  %1674 = vmatprep.mubr.f32.mxu0 0.0
  %1675 = vmatmul.mubr.f32.gmra.mxu0 %v1593
  %v1676 = vpop.f32.mrf.mxu0
  %v1677 = vadd.f32 %v1581, %v1676
  %v1678 = vpop.f32.mrf.mxu0
  %1679 = vdwg.mxu0
  %v1680 = vmul.f32 %v1662, 0.5
  %v1681 = vmul.f32 %v1667, 0.5
  %v1682 = vmul.f32 %v1672, 0.5
  %v1683 = vmul.f32 %v1677, 0.5
  %v1684 = vtanh.pop %v1680
  %v1685 = vtanh.pop %v1681
  %v1686 = vtanh.pop %v1682
  %v1687 = vtanh.pop %v1683
  %v1688 = vadd.f32 %v1684, 1.0
  %v1689 = vmul.f32 %v1686, 0.5
  %v1690 = vmul.f32 %v1687, 0.5
  %v1691 = vmul.f32 %v1688, %v1475
  %v1692 = vmul.f32 %v1685, %v1475
  %v1693 = vmul.f32 %v1688, %v1481
  %v1694 = vadd.f32 %v1693, %v1689
  %v1695 = vmul.f32 %v1685, %v1481
  %v1696 = vadd.f32 %v1695, %v1690
  %1698 = vset.pattern.permute.xlu0 0
  %1699 = vperm.xlu0 %1698, %v1691
  %v1700 = vpop.permute.xlu0 %1699
  %v1702 = vmul.f32 %v1700, %v1363
  %v1703 = vmul.f32 %v1700, %v1365
  %1705 = vset.pattern.permute.xlu0 0
  %1706 = vperm.xlu0 %1705, %v1694
  %v1707 = vpop.permute.xlu0 %1706
  %v1709 = vadd.f32 %v1702, %v1707
  %v1710 = vadd.f32 %v1703, %v1707
  %1712 = vset.pattern.permute.xlu0 0
  %1713 = vperm.xlu0 %1712, %v1692
  %v1714 = vpop.permute.xlu0 %1713
  %v1716 = vmul.f32 %v1714, %v1363
  %v1717 = vmul.f32 %v1714, %v1365
  %1719 = vset.pattern.permute.xlu0 0
  %1720 = vperm.xlu0 %1719, %v1696
  %v1721 = vpop.permute.xlu0 %1720
  %v1723 = vadd.f32 %v1716, %v1721
  %v1724 = vadd.f32 %v1717, %v1721
  %v1725 = vmax.f32 %v1709, %v1723
  %v1726 = vmax.f32 %v1710, %v1724
  %1727 = vset.pattern.permute.xlu0 1
  %1728 = vperm.xlu0 %1727, %v1691
  %v1729 = vpop.permute.xlu0 %1728
  %v1731 = vmul.f32 %v1729, %v1434
  %v1732 = vmul.f32 %v1729, %v1436
  %1733 = vset.pattern.permute.xlu0 1
  %1734 = vperm.xlu0 %1733, %v1694
  %v1735 = vpop.permute.xlu0 %1734
  %v1737 = vadd.f32 %v1731, %v1735
  %v1738 = vadd.f32 %v1732, %v1735
  %1739 = vset.pattern.permute.xlu0 1
  %1740 = vperm.xlu0 %1739, %v1692
  %v1741 = vpop.permute.xlu0 %1740
  %v1743 = vmul.f32 %v1741, %v1434
  %v1744 = vmul.f32 %v1741, %v1436
  %1745 = vset.pattern.permute.xlu0 1
  %1746 = vperm.xlu0 %1745, %v1696
  %v1747 = vpop.permute.xlu0 %1746
  %v1749 = vadd.f32 %v1743, %v1747
  %v1750 = vadd.f32 %v1744, %v1747
  %v1751 = vmax.f32 %v1737, %v1749
  %v1752 = vmax.f32 %v1738, %v1750
  %1753 = vst [vmem:[%s16] sm:$0xff] %v1725
  %1754 = vst [vmem:[%s16 + $0x8] sm:$0xff] %v1726
  %s1755 = scalar_lea.vmem %s16, 16
  %1756 = vst [vmem:[%s1755] sm:$0xff] %v1751
  %1757 = vst [vmem:[%s1755 + $0x8] sm:$0xff] %v1752
  // Predicated region
  $region66: #{conv_block_forward.1} parent=0 // pred_check
    _
  $region67: #{conv_block_forward.1} parent=0 // pred_check_branch
    %1759 = sbr.rel (0) target = $region69
  $region68: #{conv_block_forward.1} parent=0 // pred_region
    _
  $region69: #{conv_block_forward.1} parent=0 // pred_fallthru
    _
  // Predicated region
  $region70: #{conv_block_forward.1} parent=0 // pred_check
    _
  $region71: #{conv_block_forward.1} parent=0 // pred_check_branch
    %1761 = sbr.rel (0) target = $region73
  $region72: #{conv_block_forward.1} parent=0 // pred_region
    _
  $region73: #{conv_block_forward.1} parent=0 // pred_fallthru
    _

</llo_original>
